<compile_context>
chip_gen: v5e
topology: v5e:2x2
jax: 0.10.0
libtpu: 0.0.40
codegen_flags: <defaults>
</compile_context>

<pallas_src>
import functools

import jax
import jax.numpy as jnp
from jax.experimental import pallas as pl
from jax.experimental.pallas import tpu as pltpu


def _round_up(x, m):
    return ((x + m - 1) // m) * m


# ------------------------------ Pallas kernel ------------------------------

def _segrnn_kernel(x_ref, last_ref,
                   wemb_ref, bemb_ref,
                   wih_ref, bgi_ref,
                   whh_ref, bhn_ref,
                   pe_ref,
                   wpred_ref, bpred_ref,
                   y_ref):
    """Fused SegRNN forward for one block of BN = (batch * channel_pad) rows.

    x_ref   : (BN, seq_len)  raw input rows (lane-dense, channel-major)
    last_ref: (BN, 1)        per-row seq_last (subtracted / re-added in-kernel)
    wemb    : (seg_len, H) bf16, bemb : (1, H) f32    valueEmbedding (Linear+ReLU)
    wih     : (H, 3H) bf16   fused GRU input weights  [r|z|n]
    bgi     : (1, 3H) f32    fused input biases       [b_ir+b_hr | b_iz+b_hz | b_in]
    whh     : (H, 3H) bf16   fused GRU hidden weights [r|z|n], bhn : (1, H) f32
    pe      : (Sy, C_pad, 3H) f32  precomputed decoder input-side gates
    wpred   : (H, seg_len) bf16, bpred : (1, seg_len) f32
    y_ref   : (BN, pred_pad) f32  prediction horizon (lane-padded to 128)
    """
    BN, L = x_ref.shape
    S, H = wemb_ref.shape
    Sx = L // S
    Sy, Cp, _ = pe_ref.shape
    reps = BN // Cp

    last = last_ref[...]                                       # (BN, 1) f32
    wemb, bemb = wemb_ref[...], bemb_ref[...]
    wih, bgi = wih_ref[...], bgi_ref[...]
    whh, bhn = whh_ref[...], bhn_ref[...]
    wpred, bpred = wpred_ref[...], bpred_ref[...]

    # Differencing folded into the kernel (kept in f32 for precision).
    xd = x_ref[...] - last                                     # (BN, L)

    # ---- encoder GRU: per-step input + hidden matmuls, fused (H,3H) gates --
    # Sx is small (<= ~16 for typical SegRNN configs) -> static unroll.
    h = jnp.zeros((BN, H), jnp.float32)
    for t in range(Sx):
        xt = xd[:, t * S:(t + 1) * S].astype(jnp.bfloat16)     # (BN, S)
        emb = jnp.maximum(
            jnp.dot(xt, wemb, preferred_element_type=jnp.float32) + bemb, 0.0)
        gi = jnp.dot(emb.astype(jnp.bfloat16), wih,
                     preferred_element_type=jnp.float32) + bgi           # (BN, 3H)
        gh = jnp.dot(h.astype(jnp.bfloat16), whh,
                     preferred_element_type=jnp.float32)                 # (BN, 3H)
        r = jax.nn.sigmoid(gi[:, :H] + gh[:, :H])
        z = jax.nn.sigmoid(gi[:, H:2 * H] + gh[:, H:2 * H])
        n = jnp.tanh(gi[:, 2 * H:] + r * (gh[:, 2 * H:] + bhn))
        h = (1.0 - z) * n + z * h

    # ---- decoder: hidden-side gates shared by all Sy output segments -------
    gh = jnp.dot(h.astype(jnp.bfloat16), whh, preferred_element_type=jnp.float32)
    gh_r, gh_z = gh[:, :H], gh[:, H:2 * H]
    gh_n = gh[:, 2 * H:] + bhn

    hys = []
    for s in range(Sy):
        # pe is batch-invariant (Sy, C_pad, 3H); replicate across the `reps`
        # batch copies transiently instead of keeping a (Sy, BN, 3H) resident.
        gi_s = jnp.tile(pe_ref[s], (reps, 1))                  # (BN, 3H)
        r = jax.nn.sigmoid(gi_s[:, :H] + gh_r)
        z = jax.nn.sigmoid(gi_s[:, H:2 * H] + gh_z)
        n = jnp.tanh(gi_s[:, 2 * H:] + r * gh_n)
        hys.append((1.0 - z) * n + z * h)                      # (BN, H)

    # One prediction matmul for the whole horizon (amortizes the wpred push).
    hy = jnp.concatenate(hys, axis=0).astype(jnp.bfloat16)     # (Sy*BN, H)
    pred = jnp.dot(hy, wpred, preferred_element_type=jnp.float32) + bpred

    # Zero the lane padding once (kept lane-dense, sliced off in the wrapper).
    if y_ref.shape[1] != Sy * S:
        y_ref[:, Sy * S:] = jnp.zeros((BN, y_ref.shape[1] - Sy * S), jnp.float32)

    # Per-segment slab stores; '+ seq_last' folded into the kernel.
    for s in range(Sy):
        y_ref[:, s * S:(s + 1) * S] = pred[s * BN:(s + 1) * BN, :] + last


# ------------------------------ spec helpers -------------------------------

def _const_spec(shape, single_buffer):
    nd = len(shape)
    idx = lambda i, _n=nd: (0,) * _n
    if single_buffer:
        # Constant-index inputs are only fetched once; a second pipeline buffer
        # is pure VMEM waste (matters most on v7x's 64 MiB VMEM).
        return pl.BlockSpec(shape, idx, pipeline_mode=pl.Buffered(1))
    return pl.BlockSpec(shape, idx)


def _pick_row_block(batch, channels, max_rows=256):
    """Row block: multiple of (8-padded) channels, divides B*C_pad, fits VMEM,
    and prefers >= 2 grid steps so v7x's two TensorCores both get work."""
    total = batch * channels
    cands = sorted({bb * channels for bb in range(1, batch + 1) if batch % bb == 0})
    for ok in (
        lambda bn: bn % 8 == 0 and bn <= max_rows and bn < total,   # grid >= 2
        lambda bn: bn % 8 == 0 and bn <= max_rows,
        lambda bn: bn <= max_rows,
    ):
        good = [bn for bn in cands if ok(bn)]
        if good:
            return max(good)
    return channels   # last resort: one batch's channels per grid step


def _vmem_limit_bytes():
    """Adaptive scoped-VMEM limit: ~75% of physical, capped at 96 MiB."""
    try:
        info = pltpu.get_tpu_info()
        cap = getattr(info, "vmem_capacity_bytes", None)
        if cap:
            return int(max(32 * 1024 * 1024, min(cap * 3 // 4, 96 * 1024 * 1024)))
    except Exception:
        pass
    return 64 * 1024 * 1024


# ------------------------------- SegRNN model ------------------------------

class SegRNNPallas:
    def __init__(self, seq_len, pred_len, seg_len, enc_in, d_model, key,
                 max_block_rows=256):
        assert seq_len % seg_len == 0 and pred_len % seg_len == 0
        assert d_model % 2 == 0
        self.seq_len = seq_len
        self.pred_len = pred_len
        self.seg_len = seg_len
        self.enc_in = enc_in
        self.d_model = d_model
        self.seg_num_x = seq_len // seg_len
        self.seg_num_y = pred_len // seg_len
        self.c_pad = _round_up(enc_in, 8)           # 8-aligned row blocks for any enc_in
        self.pred_pad = _round_up(pred_len, 128)    # lane-dense output stores
        self.max_block_rows = max_block_rows
        self.single_buffer_weights = True

        H = d_model
        Sy, Cp = self.seg_num_y, self.c_pad
        ks = jax.random.split(key, 10)
        s = 0.1
        # f32 master parameters (also used by the pure-JAX reference).
        self.w_emb = (jax.random.normal(ks[0], (seg_len, H)) * s).astype(jnp.float32)
        self.b_emb = (jax.random.normal(ks[1], (1, H)) * s).astype(jnp.float32)
        # GRU weights, PyTorch gate order [r, z, n], stored as (in, 3H).
        self.w_ih = (jax.random.normal(ks[2], (H, 3 * H)) * s).astype(jnp.float32)
        self.b_ih = (jax.random.normal(ks[3], (1, 3 * H)) * s).astype(jnp.float32)
        self.w_hh = (jax.random.normal(ks[4], (H, 3 * H)) * s).astype(jnp.float32)
        self.b_hh = (jax.random.normal(ks[5], (1, 3 * H)) * s).astype(jnp.float32)
        self.pos_emb = jax.random.normal(ks[6], (Sy, H // 2)).astype(jnp.float32)
        self.channel_emb = jax.random.normal(ks[7], (enc_in, H // 2)).astype(jnp.float32)
        # predict: Dropout (identity in eval) + Linear(d_model -> seg_len).
        self.w_pred = (jax.random.normal(ks[8], (H, seg_len)) * s).astype(jnp.float32)
        self.b_pred = (jax.random.normal(ks[9], (1, seg_len)) * s).astype(jnp.float32)

        # ---- kernel-side parameters: bf16 matmul operands, f32 biases ------
        self.w_emb_k = self.w_emb.astype(jnp.bfloat16)
        self.w_ih_k = self.w_ih.astype(jnp.bfloat16)
        self.w_hh_k = self.w_hh.astype(jnp.bfloat16)
        self.w_pred_k = self.w_pred.astype(jnp.bfloat16)
        # Fused input biases: [b_ir + b_hr | b_iz + b_hz | b_in]; b_hn kept apart.
        self.b_gi = jnp.concatenate(
            [self.b_ih[:, :H] + self.b_hh[:, :H],
             self.b_ih[:, H:2 * H] + self.b_hh[:, H:2 * H],
             self.b_ih[:, 2 * H:]], axis=-1)
        self.b_hn = self.b_hh[:, 2 * H:]

        # Decoder input-side gates depend only on (segment, channel): compute
        # them ONCE at init, de-duplicated across batch -> (Sy, C_pad, 3H).
        ce = jnp.pad(self.channel_emb, ((0, Cp - enc_in), (0, 0)))
        pe = jnp.concatenate(
            [jnp.broadcast_to(self.pos_emb[None], (Cp, Sy, H // 2)),
             jnp.broadcast_to(ce[:, None], (Cp, Sy, H // 2))],
            axis=-1).reshape(Cp * Sy, H)
        pe_gi = jnp.dot(pe.astype(jnp.bfloat16), self.w_ih_k,
                        preferred_element_type=jnp.float32) + self.b_gi
        self.pe_gi = pe_gi.reshape(Cp, Sy, 3 * H).transpose(1, 0, 2)   # (Sy, Cp, 3H)

    # ------------------------------ forward --------------------------------
    def __call__(self, x):
        """x: (batch, seq_len, enc_in) -> (batch, pred_len, enc_in)"""
        B = x.shape[0]
        C, Cp = self.enc_in, self.c_pad
        S, L = self.seg_len, self.seq_len
        P, Pp = self.pred_len, self.pred_pad

        x = x.astype(jnp.float32)
        if Cp != C:
            x = jnp.pad(x, ((0, 0), (0, 0), (0, Cp - C)))
        # Channel-major, lane-dense rows; subtraction happens in-kernel.
        x2d = jnp.transpose(x, (0, 2, 1)).reshape(B * Cp, L)   # (B*Cp, seq_len)
        seq_last = x2d[:, L - 1:]                              # (B*Cp, 1)

        total = B * Cp
        bn_rows = _pick_row_block(B, Cp, self.max_block_rows)
        grid = (total // bn_rows,)

        weights = (self.w_emb_k, self.b_emb, self.w_ih_k, self.b_gi,
                   self.w_hh_k, self.b_hn, self.pe_gi,
                   self.w_pred_k, self.b_pred)
        sb = self.single_buffer_weights
        in_specs = ([pl.BlockSpec((bn_rows, L), lambda i: (i, 0)),
                     pl.BlockSpec((bn_rows, 1), lambda i: (i, 0))]
                    + [_const_spec(w.shape, sb) for w in weights])
        out_spec = pl.BlockSpec((bn_rows, Pp), lambda i: (i, 0))

        y2 = pl.pallas_call(
            _segrnn_kernel,
            out_shape=jax.ShapeDtypeStruct((total, Pp), jnp.float32),
            grid=grid,
            in_specs=in_specs,
            out_specs=out_spec,
            compiler_params=pltpu.CompilerParams(
                dimension_semantics=("parallel",),
                vmem_limit_bytes=_vmem_limit_bytes()),
        )(x2d, seq_last, *weights)                             # (B*Cp, Pp)

        # '+ seq_last' was applied in-kernel; drop channel / lane padding.
        y = y2.reshape(B, Cp, Pp)[:, :C, :P].transpose(0, 2, 1)
        return y

    # Pure-JAX reference (same bf16-operand / f32-accumulate math, no Pallas).
    def reference(self, x):
        B = x.shape[0]
        C, H, S = self.enc_in, self.d_model, self.seg_len
        Sx, Sy = self.seg_num_x, self.seg_num_y

        def bdot(a, w):
            return jnp.dot(a.astype(jnp.bfloat16), w.astype(jnp.bfloat16),
                           preferred_element_type=jnp.float32)

        def gru_step(gi, h):
            gh = bdot(h, self.w_hh) + self.b_hh
            r = jax.nn.sigmoid(gi[:, :H] + gh[:, :H])
            z = jax.nn.sigmoid(gi[:, H:2 * H] + gh[:, H:2 * H])
            n = jnp.tanh(gi[:, 2 * H:] + r * gh[:, 2 * H:])
            return (1.0 - z) * n + z * h

        seq_last = x[:, -1:, :]
        xd = (x - seq_last).transpose(0, 2, 1).reshape(B * C, Sx, S).astype(jnp.float32)

        h = jnp.zeros((B * C, H), jnp.float32)
        for t in range(Sx):
            emb = jnp.maximum(bdot(xd[:, t, :], self.w_emb) + self.b_emb, 0.0)
            gi = bdot(emb, self.w_ih) + self.b_ih
            h = gru_step(gi, h)

        pe = jnp.concatenate(
            [jnp.broadcast_to(self.pos_emb[None], (C, Sy, H // 2)),
             jnp.broadcast_to(self.channel_emb[:, None], (C, Sy, H // 2))],
            axis=-1).reshape(C * Sy, H)
        gi = bdot(pe, self.w_ih) + self.b_ih                       # (C*Sy, 3H)
        gi = jnp.broadcast_to(gi[None], (B, C * Sy, 3 * H)).reshape(B * C * Sy, 3 * H)
        h0 = jnp.broadcast_to(h[:, None, :], (B * C, Sy, H)).reshape(B * C * Sy, H)
        hy = gru_step(gi, h0)
        y = bdot(hy, self.w_pred) + self.b_pred
        return y.reshape(B, C, self.pred_len).transpose(0, 2, 1) + seq_last


# ---------------------------------- main -----------------------------------

if __name__ == "__main__":
    # Small config: seq_len=16, pred_len=8, seg_len=4, enc_in=4, d_model=32.
    B, SEQ, PRED, SEG, C, D = 2, 16, 8, 4, 4, 32

    key = jax.random.PRNGKey(0)
    k_param, k_x = jax.random.split(key)
    model = SegRNNPallas(seq_len=SEQ, pred_len=PRED, seg_len=SEG,
                         enc_in=C, d_model=D, key=k_param)

    x = jax.random.normal(k_x, (B, SEQ, C), dtype=jnp.float32)

    def run(single_buffer):
        model.single_buffer_weights = single_buffer
        fwd = jax.jit(lambda xx: model(xx))
        return jax.block_until_ready(fwd(x))

    try:
        y = run(True)
    except Exception:
        # This JAX/Mosaic build rejected pl.Buffered(1) single-buffering of the
        # constant weight inputs; rerun with default double-buffering.
        y = run(False)

    y_ref = jax.block_until_ready(model.reference(x))
    assert y.shape == (B, PRED, C)
    assert jnp.allclose(y, y_ref, atol=1e-3, rtol=1e-3), "mismatch vs reference"

    print("KERNEL_OK")
</pallas_src>

<mosaic_0001>
module attributes {stable_mosaic.version = 11 : i64} {
  func.func @_segrnn_kernel(%arg0: i32, %arg1: memref<8x16xf32, #tpu.memory_space<vmem>>, %arg2: memref<8x1xf32, #tpu.memory_space<vmem>>, %arg3: memref<4x32xbf16, #tpu.memory_space<vmem>>, %arg4: memref<1x32xf32, #tpu.memory_space<vmem>>, %arg5: memref<32x96xbf16, #tpu.memory_space<vmem>>, %arg6: memref<1x96xf32, #tpu.memory_space<vmem>>, %arg7: memref<32x96xbf16, #tpu.memory_space<vmem>>, %arg8: memref<1x32xf32, #tpu.memory_space<vmem>>, %arg9: memref<2x8x96xf32, #tpu.memory_space<vmem>>, %arg10: memref<32x4xbf16, #tpu.memory_space<vmem>>, %arg11: memref<1x4xf32, #tpu.memory_space<vmem>>, %arg12: memref<8x128xf32, #tpu.memory_space<vmem>>) attributes {dimension_semantics = [#tpu.dimension_semantics<parallel>], iteration_bounds = array<i64: 2>, scalar_prefetch = 0 : i64, scratch_operands = 0 : i64, tpu.core_type = #tpu.core_type<tc>, window_params = [{transform_indices = @transform_0, window_bounds = array<i64: 8, 16>}, {transform_indices = @transform_1, window_bounds = array<i64: 8, 1>}, {pipeline_mode = #tpu.pipeline_mode<synchronous>, transform_indices = @transform_2, window_bounds = array<i64: 4, 32>}, {pipeline_mode = #tpu.pipeline_mode<synchronous>, transform_indices = @transform_3, window_bounds = array<i64: 1, 32>}, {pipeline_mode = #tpu.pipeline_mode<synchronous>, transform_indices = @transform_4, window_bounds = array<i64: 32, 96>}, {pipeline_mode = #tpu.pipeline_mode<synchronous>, transform_indices = @transform_5, window_bounds = array<i64: 1, 96>}, {pipeline_mode = #tpu.pipeline_mode<synchronous>, transform_indices = @transform_6, window_bounds = array<i64: 32, 96>}, {pipeline_mode = #tpu.pipeline_mode<synchronous>, transform_indices = @transform_7, window_bounds = array<i64: 1, 32>}, {pipeline_mode = #tpu.pipeline_mode<synchronous>, transform_indices = @transform_8, window_bounds = array<i64: 2, 8, 96>}, {pipeline_mode = #tpu.pipeline_mode<synchronous>, transform_indices = @transform_9, window_bounds = array<i64: 32, 4>}, {pipeline_mode = #tpu.pipeline_mode<synchronous>, transform_indices = @transform_10, window_bounds = array<i64: 1, 4>}, {transform_indices = @transform_11, window_bounds = array<i64: 8, 128>}]} {
    %c0 = arith.constant 0 : index
    %c0_0 = arith.constant 0 : index
    %0 = vector.load %arg2[%c0, %c0_0] : memref<8x1xf32, #tpu.memory_space<vmem>>, vector<8x1xf32>
    %c0_1 = arith.constant 0 : index
    %c0_2 = arith.constant 0 : index
    %1 = vector.load %arg3[%c0_1, %c0_2] : memref<4x32xbf16, #tpu.memory_space<vmem>>, vector<4x32xbf16>
    %c0_3 = arith.constant 0 : index
    %c0_4 = arith.constant 0 : index
    %2 = vector.load %arg4[%c0_3, %c0_4] : memref<1x32xf32, #tpu.memory_space<vmem>>, vector<1x32xf32>
    %c0_5 = arith.constant 0 : index
    %c0_6 = arith.constant 0 : index
    %3 = vector.load %arg5[%c0_5, %c0_6] : memref<32x96xbf16, #tpu.memory_space<vmem>>, vector<32x96xbf16>
    %c0_7 = arith.constant 0 : index
    %c0_8 = arith.constant 0 : index
    %4 = vector.load %arg6[%c0_7, %c0_8] : memref<1x96xf32, #tpu.memory_space<vmem>>, vector<1x96xf32>
    %c0_9 = arith.constant 0 : index
    %c0_10 = arith.constant 0 : index
    %5 = vector.load %arg7[%c0_9, %c0_10] : memref<32x96xbf16, #tpu.memory_space<vmem>>, vector<32x96xbf16>
    %c0_11 = arith.constant 0 : index
    %c0_12 = arith.constant 0 : index
    %6 = vector.load %arg8[%c0_11, %c0_12] : memref<1x32xf32, #tpu.memory_space<vmem>>, vector<1x32xf32>
    %c0_13 = arith.constant 0 : index
    %c0_14 = arith.constant 0 : index
    %7 = vector.load %arg10[%c0_13, %c0_14] : memref<32x4xbf16, #tpu.memory_space<vmem>>, vector<32x4xbf16>
    %c0_15 = arith.constant 0 : index
    %c0_16 = arith.constant 0 : index
    %8 = vector.load %arg11[%c0_15, %c0_16] : memref<1x4xf32, #tpu.memory_space<vmem>>, vector<1x4xf32>
    %c0_17 = arith.constant 0 : index
    %c0_18 = arith.constant 0 : index
    %9 = vector.load %arg1[%c0_17, %c0_18] : memref<8x16xf32, #tpu.memory_space<vmem>>, vector<8x16xf32>
    %10 = vector.broadcast %0 : vector<8x1xf32> to vector<8x16xf32>
    %11 = arith.subf %9, %10 : vector<8x16xf32>
    %cst = arith.constant 0.000000e+00 : f32
    %12 = vector.broadcast %cst : f32 to vector<8x32xf32>
    %13 = vector.extract_strided_slice %11 {offsets = [0, 0], sizes = [8, 4], strides = [1, 1]} : vector<8x16xf32> to vector<8x4xf32>
    %14 = arith.truncf %13 : vector<8x4xf32> to vector<8x4xbf16>
    %cst_19 = arith.constant dense<0.000000e+00> : vector<8x32xf32>
    %15 = tpu.matmul %14, %1, %cst_19 {dimension_numbers = #tpu.dot_dimension_numbers<[1], [0], [0], [1], [0, 0, 1, 1], [], []>} : vector<8x4xbf16>, vector<4x32xbf16>, vector<8x32xf32> -> vector<8x32xf32>
    %16 = vector.broadcast %2 : vector<1x32xf32> to vector<8x32xf32>
    %17 = arith.addf %15, %16 : vector<8x32xf32>
    %cst_20 = arith.constant 0.000000e+00 : f32
    %18 = vector.broadcast %cst_20 : f32 to vector<8x32xf32>
    %19 = arith.maximumf %17, %18 : vector<8x32xf32>
    %20 = arith.truncf %19 : vector<8x32xf32> to vector<8x32xbf16>
    %cst_21 = arith.constant dense<0.000000e+00> : vector<8x96xf32>
    %21 = tpu.matmul %20, %3, %cst_21 {dimension_numbers = #tpu.dot_dimension_numbers<[1], [0], [0], [1], [0, 0, 1, 1], [], []>} : vector<8x32xbf16>, vector<32x96xbf16>, vector<8x96xf32> -> vector<8x96xf32>
    %22 = vector.broadcast %4 : vector<1x96xf32> to vector<8x96xf32>
    %23 = arith.addf %21, %22 : vector<8x96xf32>
    %24 = arith.truncf %12 : vector<8x32xf32> to vector<8x32xbf16>
    %cst_22 = arith.constant dense<0.000000e+00> : vector<8x96xf32>
    %25 = tpu.matmul %24, %5, %cst_22 {dimension_numbers = #tpu.dot_dimension_numbers<[1], [0], [0], [1], [0, 0, 1, 1], [], []>} : vector<8x32xbf16>, vector<32x96xbf16>, vector<8x96xf32> -> vector<8x96xf32>
    %26 = vector.extract_strided_slice %23 {offsets = [0, 0], sizes = [8, 32], strides = [1, 1]} : vector<8x96xf32> to vector<8x32xf32>
    %27 = vector.extract_strided_slice %25 {offsets = [0, 0], sizes = [8, 32], strides = [1, 1]} : vector<8x96xf32> to vector<8x32xf32>
    %28 = arith.addf %26, %27 : vector<8x32xf32>
    %29 = arith.negf %28 : vector<8x32xf32>
    %30 = math.exp %29 : vector<8x32xf32>
    %cst_23 = arith.constant 1.000000e+00 : f32
    %31 = vector.broadcast %cst_23 : f32 to vector<8x32xf32>
    %32 = arith.addf %31, %30 : vector<8x32xf32>
    %33 = arith.divf %31, %32 : vector<8x32xf32>
    %34 = vector.extract_strided_slice %23 {offsets = [0, 32], sizes = [8, 32], strides = [1, 1]} : vector<8x96xf32> to vector<8x32xf32>
    %35 = vector.extract_strided_slice %25 {offsets = [0, 32], sizes = [8, 32], strides = [1, 1]} : vector<8x96xf32> to vector<8x32xf32>
    %36 = arith.addf %34, %35 : vector<8x32xf32>
    %37 = arith.negf %36 : vector<8x32xf32>
    %38 = math.exp %37 : vector<8x32xf32>
    %cst_24 = arith.constant 1.000000e+00 : f32
    %39 = vector.broadcast %cst_24 : f32 to vector<8x32xf32>
    %40 = arith.addf %39, %38 : vector<8x32xf32>
    %41 = arith.divf %39, %40 : vector<8x32xf32>
    %42 = vector.extract_strided_slice %23 {offsets = [0, 64], sizes = [8, 32], strides = [1, 1]} : vector<8x96xf32> to vector<8x32xf32>
    %43 = vector.extract_strided_slice %25 {offsets = [0, 64], sizes = [8, 32], strides = [1, 1]} : vector<8x96xf32> to vector<8x32xf32>
    %44 = vector.broadcast %6 : vector<1x32xf32> to vector<8x32xf32>
    %45 = arith.addf %43, %44 : vector<8x32xf32>
    %46 = arith.mulf %33, %45 : vector<8x32xf32>
    %47 = arith.addf %42, %46 : vector<8x32xf32>
    %48 = math.tanh %47 : vector<8x32xf32>
    %cst_25 = arith.constant 1.000000e+00 : f32
    %49 = vector.broadcast %cst_25 : f32 to vector<8x32xf32>
    %50 = arith.subf %49, %41 : vector<8x32xf32>
    %51 = arith.mulf %50, %48 : vector<8x32xf32>
    %52 = arith.mulf %41, %12 : vector<8x32xf32>
    %53 = arith.addf %51, %52 : vector<8x32xf32>
    %54 = vector.extract_strided_slice %11 {offsets = [0, 4], sizes = [8, 4], strides = [1, 1]} : vector<8x16xf32> to vector<8x4xf32>
    %55 = arith.truncf %54 : vector<8x4xf32> to vector<8x4xbf16>
    %cst_26 = arith.constant dense<0.000000e+00> : vector<8x32xf32>
    %56 = tpu.matmul %55, %1, %cst_26 {dimension_numbers = #tpu.dot_dimension_numbers<[1], [0], [0], [1], [0, 0, 1, 1], [], []>} : vector<8x4xbf16>, vector<4x32xbf16>, vector<8x32xf32> -> vector<8x32xf32>
    %57 = vector.broadcast %2 : vector<1x32xf32> to vector<8x32xf32>
    %58 = arith.addf %56, %57 : vector<8x32xf32>
    %cst_27 = arith.constant 0.000000e+00 : f32
    %59 = vector.broadcast %cst_27 : f32 to vector<8x32xf32>
    %60 = arith.maximumf %58, %59 : vector<8x32xf32>
    %61 = arith.truncf %60 : vector<8x32xf32> to vector<8x32xbf16>
    %cst_28 = arith.constant dense<0.000000e+00> : vector<8x96xf32>
    %62 = tpu.matmul %61, %3, %cst_28 {dimension_numbers = #tpu.dot_dimension_numbers<[1], [0], [0], [1], [0, 0, 1, 1], [], []>} : vector<8x32xbf16>, vector<32x96xbf16>, vector<8x96xf32> -> vector<8x96xf32>
    %63 = vector.broadcast %4 : vector<1x96xf32> to vector<8x96xf32>
    %64 = arith.addf %62, %63 : vector<8x96xf32>
    %65 = arith.truncf %53 : vector<8x32xf32> to vector<8x32xbf16>
    %cst_29 = arith.constant dense<0.000000e+00> : vector<8x96xf32>
    %66 = tpu.matmul %65, %5, %cst_29 {dimension_numbers = #tpu.dot_dimension_numbers<[1], [0], [0], [1], [0, 0, 1, 1], [], []>} : vector<8x32xbf16>, vector<32x96xbf16>, vector<8x96xf32> -> vector<8x96xf32>
    %67 = vector.extract_strided_slice %64 {offsets = [0, 0], sizes = [8, 32], strides = [1, 1]} : vector<8x96xf32> to vector<8x32xf32>
    %68 = vector.extract_strided_slice %66 {offsets = [0, 0], sizes = [8, 32], strides = [1, 1]} : vector<8x96xf32> to vector<8x32xf32>
    %69 = arith.addf %67, %68 : vector<8x32xf32>
    %70 = arith.negf %69 : vector<8x32xf32>
    %71 = math.exp %70 : vector<8x32xf32>
    %cst_30 = arith.constant 1.000000e+00 : f32
    %72 = vector.broadcast %cst_30 : f32 to vector<8x32xf32>
    %73 = arith.addf %72, %71 : vector<8x32xf32>
    %74 = arith.divf %72, %73 : vector<8x32xf32>
    %75 = vector.extract_strided_slice %64 {offsets = [0, 32], sizes = [8, 32], strides = [1, 1]} : vector<8x96xf32> to vector<8x32xf32>
    %76 = vector.extract_strided_slice %66 {offsets = [0, 32], sizes = [8, 32], strides = [1, 1]} : vector<8x96xf32> to vector<8x32xf32>
    %77 = arith.addf %75, %76 : vector<8x32xf32>
    %78 = arith.negf %77 : vector<8x32xf32>
    %79 = math.exp %78 : vector<8x32xf32>
    %cst_31 = arith.constant 1.000000e+00 : f32
    %80 = vector.broadcast %cst_31 : f32 to vector<8x32xf32>
    %81 = arith.addf %80, %79 : vector<8x32xf32>
    %82 = arith.divf %80, %81 : vector<8x32xf32>
    %83 = vector.extract_strided_slice %64 {offsets = [0, 64], sizes = [8, 32], strides = [1, 1]} : vector<8x96xf32> to vector<8x32xf32>
    %84 = vector.extract_strided_slice %66 {offsets = [0, 64], sizes = [8, 32], strides = [1, 1]} : vector<8x96xf32> to vector<8x32xf32>
    %85 = vector.broadcast %6 : vector<1x32xf32> to vector<8x32xf32>
    %86 = arith.addf %84, %85 : vector<8x32xf32>
    %87 = arith.mulf %74, %86 : vector<8x32xf32>
    %88 = arith.addf %83, %87 : vector<8x32xf32>
    %89 = math.tanh %88 : vector<8x32xf32>
    %cst_32 = arith.constant 1.000000e+00 : f32
    %90 = vector.broadcast %cst_32 : f32 to vector<8x32xf32>
    %91 = arith.subf %90, %82 : vector<8x32xf32>
    %92 = arith.mulf %91, %89 : vector<8x32xf32>
    %93 = arith.mulf %82, %53 : vector<8x32xf32>
    %94 = arith.addf %92, %93 : vector<8x32xf32>
    %95 = vector.extract_strided_slice %11 {offsets = [0, 8], sizes = [8, 4], strides = [1, 1]} : vector<8x16xf32> to vector<8x4xf32>
    %96 = arith.truncf %95 : vector<8x4xf32> to vector<8x4xbf16>
    %cst_33 = arith.constant dense<0.000000e+00> : vector<8x32xf32>
    %97 = tpu.matmul %96, %1, %cst_33 {dimension_numbers = #tpu.dot_dimension_numbers<[1], [0], [0], [1], [0, 0, 1, 1], [], []>} : vector<8x4xbf16>, vector<4x32xbf16>, vector<8x32xf32> -> vector<8x32xf32>
    %98 = vector.broadcast %2 : vector<1x32xf32> to vector<8x32xf32>
    %99 = arith.addf %97, %98 : vector<8x32xf32>
    %cst_34 = arith.constant 0.000000e+00 : f32
    %100 = vector.broadcast %cst_34 : f32 to vector<8x32xf32>
    %101 = arith.maximumf %99, %100 : vector<8x32xf32>
    %102 = arith.truncf %101 : vector<8x32xf32> to vector<8x32xbf16>
    %cst_35 = arith.constant dense<0.000000e+00> : vector<8x96xf32>
    %103 = tpu.matmul %102, %3, %cst_35 {dimension_numbers = #tpu.dot_dimension_numbers<[1], [0], [0], [1], [0, 0, 1, 1], [], []>} : vector<8x32xbf16>, vector<32x96xbf16>, vector<8x96xf32> -> vector<8x96xf32>
    %104 = vector.broadcast %4 : vector<1x96xf32> to vector<8x96xf32>
    %105 = arith.addf %103, %104 : vector<8x96xf32>
    %106 = arith.truncf %94 : vector<8x32xf32> to vector<8x32xbf16>
    %cst_36 = arith.constant dense<0.000000e+00> : vector<8x96xf32>
    %107 = tpu.matmul %106, %5, %cst_36 {dimension_numbers = #tpu.dot_dimension_numbers<[1], [0], [0], [1], [0, 0, 1, 1], [], []>} : vector<8x32xbf16>, vector<32x96xbf16>, vector<8x96xf32> -> vector<8x96xf32>
    %108 = vector.extract_strided_slice %105 {offsets = [0, 0], sizes = [8, 32], strides = [1, 1]} : vector<8x96xf32> to vector<8x32xf32>
    %109 = vector.extract_strided_slice %107 {offsets = [0, 0], sizes = [8, 32], strides = [1, 1]} : vector<8x96xf32> to vector<8x32xf32>
    %110 = arith.addf %108, %109 : vector<8x32xf32>
    %111 = arith.negf %110 : vector<8x32xf32>
    %112 = math.exp %111 : vector<8x32xf32>
    %cst_37 = arith.constant 1.000000e+00 : f32
    %113 = vector.broadcast %cst_37 : f32 to vector<8x32xf32>
    %114 = arith.addf %113, %112 : vector<8x32xf32>
    %115 = arith.divf %113, %114 : vector<8x32xf32>
    %116 = vector.extract_strided_slice %105 {offsets = [0, 32], sizes = [8, 32], strides = [1, 1]} : vector<8x96xf32> to vector<8x32xf32>
    %117 = vector.extract_strided_slice %107 {offsets = [0, 32], sizes = [8, 32], strides = [1, 1]} : vector<8x96xf32> to vector<8x32xf32>
    %118 = arith.addf %116, %117 : vector<8x32xf32>
    %119 = arith.negf %118 : vector<8x32xf32>
    %120 = math.exp %119 : vector<8x32xf32>
    %cst_38 = arith.constant 1.000000e+00 : f32
    %121 = vector.broadcast %cst_38 : f32 to vector<8x32xf32>
    %122 = arith.addf %121, %120 : vector<8x32xf32>
    %123 = arith.divf %121, %122 : vector<8x32xf32>
    %124 = vector.extract_strided_slice %105 {offsets = [0, 64], sizes = [8, 32], strides = [1, 1]} : vector<8x96xf32> to vector<8x32xf32>
    %125 = vector.extract_strided_slice %107 {offsets = [0, 64], sizes = [8, 32], strides = [1, 1]} : vector<8x96xf32> to vector<8x32xf32>
    %126 = vector.broadcast %6 : vector<1x32xf32> to vector<8x32xf32>
    %127 = arith.addf %125, %126 : vector<8x32xf32>
    %128 = arith.mulf %115, %127 : vector<8x32xf32>
    %129 = arith.addf %124, %128 : vector<8x32xf32>
    %130 = math.tanh %129 : vector<8x32xf32>
    %cst_39 = arith.constant 1.000000e+00 : f32
    %131 = vector.broadcast %cst_39 : f32 to vector<8x32xf32>
    %132 = arith.subf %131, %123 : vector<8x32xf32>
    %133 = arith.mulf %132, %130 : vector<8x32xf32>
    %134 = arith.mulf %123, %94 : vector<8x32xf32>
    %135 = arith.addf %133, %134 : vector<8x32xf32>
    %136 = vector.extract_strided_slice %11 {offsets = [0, 12], sizes = [8, 4], strides = [1, 1]} : vector<8x16xf32> to vector<8x4xf32>
    %137 = arith.truncf %136 : vector<8x4xf32> to vector<8x4xbf16>
    %cst_40 = arith.constant dense<0.000000e+00> : vector<8x32xf32>
    %138 = tpu.matmul %137, %1, %cst_40 {dimension_numbers = #tpu.dot_dimension_numbers<[1], [0], [0], [1], [0, 0, 1, 1], [], []>} : vector<8x4xbf16>, vector<4x32xbf16>, vector<8x32xf32> -> vector<8x32xf32>
    %139 = vector.broadcast %2 : vector<1x32xf32> to vector<8x32xf32>
    %140 = arith.addf %138, %139 : vector<8x32xf32>
    %cst_41 = arith.constant 0.000000e+00 : f32
    %141 = vector.broadcast %cst_41 : f32 to vector<8x32xf32>
    %142 = arith.maximumf %140, %141 : vector<8x32xf32>
    %143 = arith.truncf %142 : vector<8x32xf32> to vector<8x32xbf16>
    %cst_42 = arith.constant dense<0.000000e+00> : vector<8x96xf32>
    %144 = tpu.matmul %143, %3, %cst_42 {dimension_numbers = #tpu.dot_dimension_numbers<[1], [0], [0], [1], [0, 0, 1, 1], [], []>} : vector<8x32xbf16>, vector<32x96xbf16>, vector<8x96xf32> -> vector<8x96xf32>
    %145 = vector.broadcast %4 : vector<1x96xf32> to vector<8x96xf32>
    %146 = arith.addf %144, %145 : vector<8x96xf32>
    %147 = arith.truncf %135 : vector<8x32xf32> to vector<8x32xbf16>
    %cst_43 = arith.constant dense<0.000000e+00> : vector<8x96xf32>
    %148 = tpu.matmul %147, %5, %cst_43 {dimension_numbers = #tpu.dot_dimension_numbers<[1], [0], [0], [1], [0, 0, 1, 1], [], []>} : vector<8x32xbf16>, vector<32x96xbf16>, vector<8x96xf32> -> vector<8x96xf32>
    %149 = vector.extract_strided_slice %146 {offsets = [0, 0], sizes = [8, 32], strides = [1, 1]} : vector<8x96xf32> to vector<8x32xf32>
    %150 = vector.extract_strided_slice %148 {offsets = [0, 0], sizes = [8, 32], strides = [1, 1]} : vector<8x96xf32> to vector<8x32xf32>
    %151 = arith.addf %149, %150 : vector<8x32xf32>
    %152 = arith.negf %151 : vector<8x32xf32>
    %153 = math.exp %152 : vector<8x32xf32>
    %cst_44 = arith.constant 1.000000e+00 : f32
    %154 = vector.broadcast %cst_44 : f32 to vector<8x32xf32>
    %155 = arith.addf %154, %153 : vector<8x32xf32>
    %156 = arith.divf %154, %155 : vector<8x32xf32>
    %157 = vector.extract_strided_slice %146 {offsets = [0, 32], sizes = [8, 32], strides = [1, 1]} : vector<8x96xf32> to vector<8x32xf32>
    %158 = vector.extract_strided_slice %148 {offsets = [0, 32], sizes = [8, 32], strides = [1, 1]} : vector<8x96xf32> to vector<8x32xf32>
    %159 = arith.addf %157, %158 : vector<8x32xf32>
    %160 = arith.negf %159 : vector<8x32xf32>
    %161 = math.exp %160 : vector<8x32xf32>
    %cst_45 = arith.constant 1.000000e+00 : f32
    %162 = vector.broadcast %cst_45 : f32 to vector<8x32xf32>
    %163 = arith.addf %162, %161 : vector<8x32xf32>
    %164 = arith.divf %162, %163 : vector<8x32xf32>
    %165 = vector.extract_strided_slice %146 {offsets = [0, 64], sizes = [8, 32], strides = [1, 1]} : vector<8x96xf32> to vector<8x32xf32>
    %166 = vector.extract_strided_slice %148 {offsets = [0, 64], sizes = [8, 32], strides = [1, 1]} : vector<8x96xf32> to vector<8x32xf32>
    %167 = vector.broadcast %6 : vector<1x32xf32> to vector<8x32xf32>
    %168 = arith.addf %166, %167 : vector<8x32xf32>
    %169 = arith.mulf %156, %168 : vector<8x32xf32>
    %170 = arith.addf %165, %169 : vector<8x32xf32>
    %171 = math.tanh %170 : vector<8x32xf32>
    %cst_46 = arith.constant 1.000000e+00 : f32
    %172 = vector.broadcast %cst_46 : f32 to vector<8x32xf32>
    %173 = arith.subf %172, %164 : vector<8x32xf32>
    %174 = arith.mulf %173, %171 : vector<8x32xf32>
    %175 = arith.mulf %164, %135 : vector<8x32xf32>
    %176 = arith.addf %174, %175 : vector<8x32xf32>
    %177 = arith.truncf %176 : vector<8x32xf32> to vector<8x32xbf16>
    %cst_47 = arith.constant dense<0.000000e+00> : vector<8x96xf32>
    %178 = tpu.matmul %177, %5, %cst_47 {dimension_numbers = #tpu.dot_dimension_numbers<[1], [0], [0], [1], [0, 0, 1, 1], [], []>} : vector<8x32xbf16>, vector<32x96xbf16>, vector<8x96xf32> -> vector<8x96xf32>
    %179 = vector.extract_strided_slice %178 {offsets = [0, 0], sizes = [8, 32], strides = [1, 1]} : vector<8x96xf32> to vector<8x32xf32>
    %180 = vector.extract_strided_slice %178 {offsets = [0, 32], sizes = [8, 32], strides = [1, 1]} : vector<8x96xf32> to vector<8x32xf32>
    %181 = vector.extract_strided_slice %178 {offsets = [0, 64], sizes = [8, 32], strides = [1, 1]} : vector<8x96xf32> to vector<8x32xf32>
    %182 = vector.broadcast %6 : vector<1x32xf32> to vector<8x32xf32>
    %183 = arith.addf %181, %182 : vector<8x32xf32>
    %c0_48 = arith.constant 0 : index
    %c0_49 = arith.constant 0 : index
    %c0_50 = arith.constant 0 : index
    %184 = vector.load %arg9[%c0_48, %c0_49, %c0_50] : memref<2x8x96xf32, #tpu.memory_space<vmem>>, vector<1x8x96xf32>
    %185 = vector.shape_cast %184 : vector<1x8x96xf32> to vector<8x96xf32>
    %186 = vector.extract_strided_slice %185 {offsets = [0, 0], sizes = [8, 32], strides = [1, 1]} : vector<8x96xf32> to vector<8x32xf32>
    %187 = arith.addf %186, %179 : vector<8x32xf32>
    %188 = arith.negf %187 : vector<8x32xf32>
    %189 = math.exp %188 : vector<8x32xf32>
    %cst_51 = arith.constant 1.000000e+00 : f32
    %190 = vector.broadcast %cst_51 : f32 to vector<8x32xf32>
    %191 = arith.addf %190, %189 : vector<8x32xf32>
    %192 = arith.divf %190, %191 : vector<8x32xf32>
    %193 = vector.extract_strided_slice %185 {offsets = [0, 32], sizes = [8, 32], strides = [1, 1]} : vector<8x96xf32> to vector<8x32xf32>
    %194 = arith.addf %193, %180 : vector<8x32xf32>
    %195 = arith.negf %194 : vector<8x32xf32>
    %196 = math.exp %195 : vector<8x32xf32>
    %cst_52 = arith.constant 1.000000e+00 : f32
    %197 = vector.broadcast %cst_52 : f32 to vector<8x32xf32>
    %198 = arith.addf %197, %196 : vector<8x32xf32>
    %199 = arith.divf %197, %198 : vector<8x32xf32>
    %200 = vector.extract_strided_slice %185 {offsets = [0, 64], sizes = [8, 32], strides = [1, 1]} : vector<8x96xf32> to vector<8x32xf32>
    %201 = arith.mulf %192, %183 : vector<8x32xf32>
    %202 = arith.addf %200, %201 : vector<8x32xf32>
    %203 = math.tanh %202 : vector<8x32xf32>
    %cst_53 = arith.constant 1.000000e+00 : f32
    %204 = vector.broadcast %cst_53 : f32 to vector<8x32xf32>
    %205 = arith.subf %204, %199 : vector<8x32xf32>
    %206 = arith.mulf %205, %203 : vector<8x32xf32>
    %207 = arith.mulf %199, %176 : vector<8x32xf32>
    %208 = arith.addf %206, %207 : vector<8x32xf32>
    %c1 = arith.constant 1 : index
    %c0_54 = arith.constant 0 : index
    %c0_55 = arith.constant 0 : index
    %209 = vector.load %arg9[%c1, %c0_54, %c0_55] : memref<2x8x96xf32, #tpu.memory_space<vmem>>, vector<1x8x96xf32>
    %210 = vector.shape_cast %209 : vector<1x8x96xf32> to vector<8x96xf32>
    %211 = vector.extract_strided_slice %210 {offsets = [0, 0], sizes = [8, 32], strides = [1, 1]} : vector<8x96xf32> to vector<8x32xf32>
    %212 = arith.addf %211, %179 : vector<8x32xf32>
    %213 = arith.negf %212 : vector<8x32xf32>
    %214 = math.exp %213 : vector<8x32xf32>
    %cst_56 = arith.constant 1.000000e+00 : f32
    %215 = vector.broadcast %cst_56 : f32 to vector<8x32xf32>
    %216 = arith.addf %215, %214 : vector<8x32xf32>
    %217 = arith.divf %215, %216 : vector<8x32xf32>
    %218 = vector.extract_strided_slice %210 {offsets = [0, 32], sizes = [8, 32], strides = [1, 1]} : vector<8x96xf32> to vector<8x32xf32>
    %219 = arith.addf %218, %180 : vector<8x32xf32>
    %220 = arith.negf %219 : vector<8x32xf32>
    %221 = math.exp %220 : vector<8x32xf32>
    %cst_57 = arith.constant 1.000000e+00 : f32
    %222 = vector.broadcast %cst_57 : f32 to vector<8x32xf32>
    %223 = arith.addf %222, %221 : vector<8x32xf32>
    %224 = arith.divf %222, %223 : vector<8x32xf32>
    %225 = vector.extract_strided_slice %210 {offsets = [0, 64], sizes = [8, 32], strides = [1, 1]} : vector<8x96xf32> to vector<8x32xf32>
    %226 = arith.mulf %217, %183 : vector<8x32xf32>
    %227 = arith.addf %225, %226 : vector<8x32xf32>
    %228 = math.tanh %227 : vector<8x32xf32>
    %cst_58 = arith.constant 1.000000e+00 : f32
    %229 = vector.broadcast %cst_58 : f32 to vector<8x32xf32>
    %230 = arith.subf %229, %224 : vector<8x32xf32>
    %231 = arith.mulf %230, %228 : vector<8x32xf32>
    %232 = arith.mulf %224, %176 : vector<8x32xf32>
    %233 = arith.addf %231, %232 : vector<8x32xf32>
    %234 = tpu.concatenate %208, %233 in 0 : vector<8x32xf32>, vector<8x32xf32> -> vector<16x32xf32>
    %235 = arith.truncf %234 : vector<16x32xf32> to vector<16x32xbf16>
    %cst_59 = arith.constant dense<0.000000e+00> : vector<16x4xf32>
    %236 = tpu.matmul %235, %7, %cst_59 {dimension_numbers = #tpu.dot_dimension_numbers<[1], [0], [0], [1], [0, 0, 1, 1], [], []>} : vector<16x32xbf16>, vector<32x4xbf16>, vector<16x4xf32> -> vector<16x4xf32>
    %237 = vector.broadcast %8 : vector<1x4xf32> to vector<16x4xf32>
    %238 = arith.addf %236, %237 : vector<16x4xf32>
    %cst_60 = arith.constant 0.000000e+00 : f32
    %239 = vector.broadcast %cst_60 : f32 to vector<8x120xf32>
    %c0_61 = arith.constant 0 : index
    %c8 = arith.constant 8 : index
    %240 = vector.load %arg12[%c0_61, %c8] : memref<8x128xf32, #tpu.memory_space<vmem>>, vector<8x120xf32>
    tpu.vector_store %arg12[%c0_61, %c8], %239 {strides = array<i32>} : memref<8x128xf32, #tpu.memory_space<vmem>>, vector<8x120xf32>,
    %241 = vector.extract_strided_slice %238 {offsets = [0, 0], sizes = [8, 4], strides = [1, 1]} : vector<16x4xf32> to vector<8x4xf32>
    %242 = vector.broadcast %0 : vector<8x1xf32> to vector<8x4xf32>
    %243 = arith.addf %241, %242 : vector<8x4xf32>
    %c0_62 = arith.constant 0 : index
    %c0_63 = arith.constant 0 : index
    %244 = vector.load %arg12[%c0_62, %c0_63] : memref<8x128xf32, #tpu.memory_space<vmem>>, vector<8x4xf32>
    tpu.vector_store %arg12[%c0_62, %c0_63], %243 {strides = array<i32>} : memref<8x128xf32, #tpu.memory_space<vmem>>, vector<8x4xf32>,
    %245 = vector.extract_strided_slice %238 {offsets = [8, 0], sizes = [8, 4], strides = [1, 1]} : vector<16x4xf32> to vector<8x4xf32>
    %246 = vector.broadcast %0 : vector<8x1xf32> to vector<8x4xf32>
    %247 = arith.addf %245, %246 : vector<8x4xf32>
    %c0_64 = arith.constant 0 : index
    %c4 = arith.constant 4 : index
    %248 = vector.load %arg12[%c0_64, %c4] : memref<8x128xf32, #tpu.memory_space<vmem>>, vector<8x4xf32>
    tpu.vector_store %arg12[%c0_64, %c4], %247 {strides = array<i32>} : memref<8x128xf32, #tpu.memory_space<vmem>>, vector<8x4xf32>,
    return
  }
  func.func @transform_0(%arg0: i32) -> (i32, i32) {
    %c0_i32 = arith.constant 0 : i32
    %c0_i32_0 = arith.constant 0 : i32
    return %arg0, %c0_i32 : i32, i32
  }
  func.func @transform_1(%arg0: i32) -> (i32, i32) {
    %c0_i32 = arith.constant 0 : i32
    %c0_i32_0 = arith.constant 0 : i32
    return %arg0, %c0_i32 : i32, i32
  }
  func.func @transform_2(%arg0: i32) -> (i32, i32) {
    %c0_i32 = arith.constant 0 : i32
    %c0_i32_0 = arith.constant 0 : i32
    %c0_i32_1 = arith.constant 0 : i32
    return %c0_i32, %c0_i32_0 : i32, i32
  }
  func.func @transform_3(%arg0: i32) -> (i32, i32) {
    %c0_i32 = arith.constant 0 : i32
    %c0_i32_0 = arith.constant 0 : i32
    %c0_i32_1 = arith.constant 0 : i32
    return %c0_i32, %c0_i32_0 : i32, i32
  }
  func.func @transform_4(%arg0: i32) -> (i32, i32) {
    %c0_i32 = arith.constant 0 : i32
    %c0_i32_0 = arith.constant 0 : i32
    %c0_i32_1 = arith.constant 0 : i32
    return %c0_i32, %c0_i32_0 : i32, i32
  }
  func.func @transform_5(%arg0: i32) -> (i32, i32) {
    %c0_i32 = arith.constant 0 : i32
    %c0_i32_0 = arith.constant 0 : i32
    %c0_i32_1 = arith.constant 0 : i32
    return %c0_i32, %c0_i32_0 : i32, i32
  }
  func.func @transform_6(%arg0: i32) -> (i32, i32) {
    %c0_i32 = arith.constant 0 : i32
    %c0_i32_0 = arith.constant 0 : i32
    %c0_i32_1 = arith.constant 0 : i32
    return %c0_i32, %c0_i32_0 : i32, i32
  }
  func.func @transform_7(%arg0: i32) -> (i32, i32) {
    %c0_i32 = arith.constant 0 : i32
    %c0_i32_0 = arith.constant 0 : i32
    %c0_i32_1 = arith.constant 0 : i32
    return %c0_i32, %c0_i32_0 : i32, i32
  }
  func.func @transform_8(%arg0: i32) -> (i32, i32, i32) {
    %c0_i32 = arith.constant 0 : i32
    %c0_i32_0 = arith.constant 0 : i32
    %c0_i32_1 = arith.constant 0 : i32
    %c0_i32_2 = arith.constant 0 : i32
    return %c0_i32, %c0_i32_0, %c0_i32_1 : i32, i32, i32
  }
  func.func @transform_9(%arg0: i32) -> (i32, i32) {
    %c0_i32 = arith.constant 0 : i32
    %c0_i32_0 = arith.constant 0 : i32
    %c0_i32_1 = arith.constant 0 : i32
    return %c0_i32, %c0_i32_0 : i32, i32
  }
  func.func @transform_10(%arg0: i32) -> (i32, i32) {
    %c0_i32 = arith.constant 0 : i32
    %c0_i32_0 = arith.constant 0 : i32
    %c0_i32_1 = arith.constant 0 : i32
    return %c0_i32, %c0_i32_0 : i32, i32
  }
  func.func @transform_11(%arg0: i32) -> (i32, i32) {
    %c0_i32 = arith.constant 0 : i32
    %c0_i32_0 = arith.constant 0 : i32
    return %arg0, %c0_i32 : i32, i32
  }
}

module attributes {stable_mosaic.version = 11 : i64} {
  func.func @_segrnn_kernel(%arg0: i32, %arg1: memref<8x16xf32, #tpu.memory_space<vmem>>, %arg2: memref<8x1xf32, #tpu.memory_space<vmem>>, %arg3: memref<4x32xbf16, #tpu.memory_space<vmem>>, %arg4: memref<1x32xf32, #tpu.memory_space<vmem>>, %arg5: memref<32x96xbf16, #tpu.memory_space<vmem>>, %arg6: memref<1x96xf32, #tpu.memory_space<vmem>>, %arg7: memref<32x96xbf16, #tpu.memory_space<vmem>>, %arg8: memref<1x32xf32, #tpu.memory_space<vmem>>, %arg9: memref<2x8x96xf32, #tpu.memory_space<vmem>>, %arg10: memref<32x4xbf16, #tpu.memory_space<vmem>>, %arg11: memref<1x4xf32, #tpu.memory_space<vmem>>, %arg12: memref<8x128xf32, #tpu.memory_space<vmem>>) attributes {dimension_semantics = [#tpu.dimension_semantics<parallel>], iteration_bounds = array<i64: 2>, scalar_prefetch = 0 : i64, scratch_operands = 0 : i64, tpu.core_type = #tpu.core_type<tc>, window_params = [{transform_indices = @transform_0, window_bounds = array<i64: 8, 16>}, {transform_indices = @transform_1, window_bounds = array<i64: 8, 1>}, {pipeline_mode = #tpu.pipeline_mode<synchronous>, transform_indices = @transform_2, window_bounds = array<i64: 4, 32>}, {pipeline_mode = #tpu.pipeline_mode<synchronous>, transform_indices = @transform_3, window_bounds = array<i64: 1, 32>}, {pipeline_mode = #tpu.pipeline_mode<synchronous>, transform_indices = @transform_4, window_bounds = array<i64: 32, 96>}, {pipeline_mode = #tpu.pipeline_mode<synchronous>, transform_indices = @transform_5, window_bounds = array<i64: 1, 96>}, {pipeline_mode = #tpu.pipeline_mode<synchronous>, transform_indices = @transform_6, window_bounds = array<i64: 32, 96>}, {pipeline_mode = #tpu.pipeline_mode<synchronous>, transform_indices = @transform_7, window_bounds = array<i64: 1, 32>}, {pipeline_mode = #tpu.pipeline_mode<synchronous>, transform_indices = @transform_8, window_bounds = array<i64: 2, 8, 96>}, {pipeline_mode = #tpu.pipeline_mode<synchronous>, transform_indices = @transform_9, window_bounds = array<i64: 32, 4>}, {pipeline_mode = #tpu.pipeline_mode<synchronous>, transform_indices = @transform_10, window_bounds = array<i64: 1, 4>}, {transform_indices = @transform_11, window_bounds = array<i64: 8, 128>}]} {
    %c0 = arith.constant 0 : index
    %c0_0 = arith.constant 0 : index
    %0 = vector.load %arg2[%c0, %c0_0] : memref<8x1xf32, #tpu.memory_space<vmem>>, vector<8x1xf32>
    %c0_1 = arith.constant 0 : index
    %c0_2 = arith.constant 0 : index
    %1 = vector.load %arg3[%c0_1, %c0_2] : memref<4x32xbf16, #tpu.memory_space<vmem>>, vector<4x32xbf16>
    %c0_3 = arith.constant 0 : index
    %c0_4 = arith.constant 0 : index
    %2 = vector.load %arg4[%c0_3, %c0_4] : memref<1x32xf32, #tpu.memory_space<vmem>>, vector<1x32xf32>
    %c0_5 = arith.constant 0 : index
    %c0_6 = arith.constant 0 : index
    %3 = vector.load %arg5[%c0_5, %c0_6] : memref<32x96xbf16, #tpu.memory_space<vmem>>, vector<32x96xbf16>
    %c0_7 = arith.constant 0 : index
    %c0_8 = arith.constant 0 : index
    %4 = vector.load %arg6[%c0_7, %c0_8] : memref<1x96xf32, #tpu.memory_space<vmem>>, vector<1x96xf32>
    %c0_9 = arith.constant 0 : index
    %c0_10 = arith.constant 0 : index
    %5 = vector.load %arg7[%c0_9, %c0_10] : memref<32x96xbf16, #tpu.memory_space<vmem>>, vector<32x96xbf16>
    %c0_11 = arith.constant 0 : index
    %c0_12 = arith.constant 0 : index
    %6 = vector.load %arg8[%c0_11, %c0_12] : memref<1x32xf32, #tpu.memory_space<vmem>>, vector<1x32xf32>
    %c0_13 = arith.constant 0 : index
    %c0_14 = arith.constant 0 : index
    %7 = vector.load %arg10[%c0_13, %c0_14] : memref<32x4xbf16, #tpu.memory_space<vmem>>, vector<32x4xbf16>
    %c0_15 = arith.constant 0 : index
    %c0_16 = arith.constant 0 : index
    %8 = vector.load %arg11[%c0_15, %c0_16] : memref<1x4xf32, #tpu.memory_space<vmem>>, vector<1x4xf32>
    %c0_17 = arith.constant 0 : index
    %c0_18 = arith.constant 0 : index
    %9 = vector.load %arg1[%c0_17, %c0_18] : memref<8x16xf32, #tpu.memory_space<vmem>>, vector<8x16xf32>
    %10 = vector.broadcast %0 : vector<8x1xf32> to vector<8x16xf32>
    %11 = arith.subf %9, %10 : vector<8x16xf32>
    %cst = arith.constant 0.000000e+00 : f32
    %12 = vector.broadcast %cst : f32 to vector<8x32xf32>
    %13 = vector.extract_strided_slice %11 {offsets = [0, 0], sizes = [8, 4], strides = [1, 1]} : vector<8x16xf32> to vector<8x4xf32>
    %14 = arith.truncf %13 : vector<8x4xf32> to vector<8x4xbf16>
    %cst_19 = arith.constant dense<0.000000e+00> : vector<8x32xf32>
    %15 = tpu.matmul %14, %1, %cst_19 {dimension_numbers = #tpu.dot_dimension_numbers<[1], [0], [0], [1], [0, 0, 1, 1], [], []>} : vector<8x4xbf16>, vector<4x32xbf16>, vector<8x32xf32> -> vector<8x32xf32>
    %16 = vector.broadcast %2 : vector<1x32xf32> to vector<8x32xf32>
    %17 = arith.addf %15, %16 : vector<8x32xf32>
    %cst_20 = arith.constant 0.000000e+00 : f32
    %18 = vector.broadcast %cst_20 : f32 to vector<8x32xf32>
    %19 = arith.maximumf %17, %18 : vector<8x32xf32>
    %20 = arith.truncf %19 : vector<8x32xf32> to vector<8x32xbf16>
    %cst_21 = arith.constant dense<0.000000e+00> : vector<8x96xf32>
    %21 = tpu.matmul %20, %3, %cst_21 {dimension_numbers = #tpu.dot_dimension_numbers<[1], [0], [0], [1], [0, 0, 1, 1], [], []>} : vector<8x32xbf16>, vector<32x96xbf16>, vector<8x96xf32> -> vector<8x96xf32>
    %22 = vector.broadcast %4 : vector<1x96xf32> to vector<8x96xf32>
    %23 = arith.addf %21, %22 : vector<8x96xf32>
    %24 = arith.truncf %12 : vector<8x32xf32> to vector<8x32xbf16>
    %cst_22 = arith.constant dense<0.000000e+00> : vector<8x96xf32>
    %25 = tpu.matmul %24, %5, %cst_22 {dimension_numbers = #tpu.dot_dimension_numbers<[1], [0], [0], [1], [0, 0, 1, 1], [], []>} : vector<8x32xbf16>, vector<32x96xbf16>, vector<8x96xf32> -> vector<8x96xf32>
    %26 = vector.extract_strided_slice %23 {offsets = [0, 0], sizes = [8, 32], strides = [1, 1]} : vector<8x96xf32> to vector<8x32xf32>
    %27 = vector.extract_strided_slice %25 {offsets = [0, 0], sizes = [8, 32], strides = [1, 1]} : vector<8x96xf32> to vector<8x32xf32>
    %28 = arith.addf %26, %27 : vector<8x32xf32>
    %29 = arith.negf %28 : vector<8x32xf32>
    %30 = math.exp %29 : vector<8x32xf32>
    %cst_23 = arith.constant 1.000000e+00 : f32
    %31 = vector.broadcast %cst_23 : f32 to vector<8x32xf32>
    %32 = arith.addf %31, %30 : vector<8x32xf32>
    %33 = arith.divf %31, %32 : vector<8x32xf32>
    %34 = vector.extract_strided_slice %23 {offsets = [0, 32], sizes = [8, 32], strides = [1, 1]} : vector<8x96xf32> to vector<8x32xf32>
    %35 = vector.extract_strided_slice %25 {offsets = [0, 32], sizes = [8, 32], strides = [1, 1]} : vector<8x96xf32> to vector<8x32xf32>
    %36 = arith.addf %34, %35 : vector<8x32xf32>
    %37 = arith.negf %36 : vector<8x32xf32>
    %38 = math.exp %37 : vector<8x32xf32>
    %cst_24 = arith.constant 1.000000e+00 : f32
    %39 = vector.broadcast %cst_24 : f32 to vector<8x32xf32>
    %40 = arith.addf %39, %38 : vector<8x32xf32>
    %41 = arith.divf %39, %40 : vector<8x32xf32>
    %42 = vector.extract_strided_slice %23 {offsets = [0, 64], sizes = [8, 32], strides = [1, 1]} : vector<8x96xf32> to vector<8x32xf32>
    %43 = vector.extract_strided_slice %25 {offsets = [0, 64], sizes = [8, 32], strides = [1, 1]} : vector<8x96xf32> to vector<8x32xf32>
    %44 = vector.broadcast %6 : vector<1x32xf32> to vector<8x32xf32>
    %45 = arith.addf %43, %44 : vector<8x32xf32>
    %46 = arith.mulf %33, %45 : vector<8x32xf32>
    %47 = arith.addf %42, %46 : vector<8x32xf32>
    %48 = math.tanh %47 : vector<8x32xf32>
    %cst_25 = arith.constant 1.000000e+00 : f32
    %49 = vector.broadcast %cst_25 : f32 to vector<8x32xf32>
    %50 = arith.subf %49, %41 : vector<8x32xf32>
    %51 = arith.mulf %50, %48 : vector<8x32xf32>
    %52 = arith.mulf %41, %12 : vector<8x32xf32>
    %53 = arith.addf %51, %52 : vector<8x32xf32>
    %54 = vector.extract_strided_slice %11 {offsets = [0, 4], sizes = [8, 4], strides = [1, 1]} : vector<8x16xf32> to vector<8x4xf32>
    %55 = arith.truncf %54 : vector<8x4xf32> to vector<8x4xbf16>
    %cst_26 = arith.constant dense<0.000000e+00> : vector<8x32xf32>
    %56 = tpu.matmul %55, %1, %cst_26 {dimension_numbers = #tpu.dot_dimension_numbers<[1], [0], [0], [1], [0, 0, 1, 1], [], []>} : vector<8x4xbf16>, vector<4x32xbf16>, vector<8x32xf32> -> vector<8x32xf32>
    %57 = vector.broadcast %2 : vector<1x32xf32> to vector<8x32xf32>
    %58 = arith.addf %56, %57 : vector<8x32xf32>
    %cst_27 = arith.constant 0.000000e+00 : f32
    %59 = vector.broadcast %cst_27 : f32 to vector<8x32xf32>
    %60 = arith.maximumf %58, %59 : vector<8x32xf32>
    %61 = arith.truncf %60 : vector<8x32xf32> to vector<8x32xbf16>
    %cst_28 = arith.constant dense<0.000000e+00> : vector<8x96xf32>
    %62 = tpu.matmul %61, %3, %cst_28 {dimension_numbers = #tpu.dot_dimension_numbers<[1], [0], [0], [1], [0, 0, 1, 1], [], []>} : vector<8x32xbf16>, vector<32x96xbf16>, vector<8x96xf32> -> vector<8x96xf32>
    %63 = vector.broadcast %4 : vector<1x96xf32> to vector<8x96xf32>
    %64 = arith.addf %62, %63 : vector<8x96xf32>
    %65 = arith.truncf %53 : vector<8x32xf32> to vector<8x32xbf16>
    %cst_29 = arith.constant dense<0.000000e+00> : vector<8x96xf32>
    %66 = tpu.matmul %65, %5, %cst_29 {dimension_numbers = #tpu.dot_dimension_numbers<[1], [0], [0], [1], [0, 0, 1, 1], [], []>} : vector<8x32xbf16>, vector<32x96xbf16>, vector<8x96xf32> -> vector<8x96xf32>
    %67 = vector.extract_strided_slice %64 {offsets = [0, 0], sizes = [8, 32], strides = [1, 1]} : vector<8x96xf32> to vector<8x32xf32>
    %68 = vector.extract_strided_slice %66 {offsets = [0, 0], sizes = [8, 32], strides = [1, 1]} : vector<8x96xf32> to vector<8x32xf32>
    %69 = arith.addf %67, %68 : vector<8x32xf32>
    %70 = arith.negf %69 : vector<8x32xf32>
    %71 = math.exp %70 : vector<8x32xf32>
    %cst_30 = arith.constant 1.000000e+00 : f32
    %72 = vector.broadcast %cst_30 : f32 to vector<8x32xf32>
    %73 = arith.addf %72, %71 : vector<8x32xf32>
    %74 = arith.divf %72, %73 : vector<8x32xf32>
    %75 = vector.extract_strided_slice %64 {offsets = [0, 32], sizes = [8, 32], strides = [1, 1]} : vector<8x96xf32> to vector<8x32xf32>
    %76 = vector.extract_strided_slice %66 {offsets = [0, 32], sizes = [8, 32], strides = [1, 1]} : vector<8x96xf32> to vector<8x32xf32>
    %77 = arith.addf %75, %76 : vector<8x32xf32>
    %78 = arith.negf %77 : vector<8x32xf32>
    %79 = math.exp %78 : vector<8x32xf32>
    %cst_31 = arith.constant 1.000000e+00 : f32
    %80 = vector.broadcast %cst_31 : f32 to vector<8x32xf32>
    %81 = arith.addf %80, %79 : vector<8x32xf32>
    %82 = arith.divf %80, %81 : vector<8x32xf32>
    %83 = vector.extract_strided_slice %64 {offsets = [0, 64], sizes = [8, 32], strides = [1, 1]} : vector<8x96xf32> to vector<8x32xf32>
    %84 = vector.extract_strided_slice %66 {offsets = [0, 64], sizes = [8, 32], strides = [1, 1]} : vector<8x96xf32> to vector<8x32xf32>
    %85 = vector.broadcast %6 : vector<1x32xf32> to vector<8x32xf32>
    %86 = arith.addf %84, %85 : vector<8x32xf32>
    %87 = arith.mulf %74, %86 : vector<8x32xf32>
    %88 = arith.addf %83, %87 : vector<8x32xf32>
    %89 = math.tanh %88 : vector<8x32xf32>
    %cst_32 = arith.constant 1.000000e+00 : f32
    %90 = vector.broadcast %cst_32 : f32 to vector<8x32xf32>
    %91 = arith.subf %90, %82 : vector<8x32xf32>
    %92 = arith.mulf %91, %89 : vector<8x32xf32>
    %93 = arith.mulf %82, %53 : vector<8x32xf32>
    %94 = arith.addf %92, %93 : vector<8x32xf32>
    %95 = vector.extract_strided_slice %11 {offsets = [0, 8], sizes = [8, 4], strides = [1, 1]} : vector<8x16xf32> to vector<8x4xf32>
    %96 = arith.truncf %95 : vector<8x4xf32> to vector<8x4xbf16>
    %cst_33 = arith.constant dense<0.000000e+00> : vector<8x32xf32>
    %97 = tpu.matmul %96, %1, %cst_33 {dimension_numbers = #tpu.dot_dimension_numbers<[1], [0], [0], [1], [0, 0, 1, 1], [], []>} : vector<8x4xbf16>, vector<4x32xbf16>, vector<8x32xf32> -> vector<8x32xf32>
    %98 = vector.broadcast %2 : vector<1x32xf32> to vector<8x32xf32>
    %99 = arith.addf %97, %98 : vector<8x32xf32>
    %cst_34 = arith.constant 0.000000e+00 : f32
    %100 = vector.broadcast %cst_34 : f32 to vector<8x32xf32>
    %101 = arith.maximumf %99, %100 : vector<8x32xf32>
    %102 = arith.truncf %101 : vector<8x32xf32> to vector<8x32xbf16>
    %cst_35 = arith.constant dense<0.000000e+00> : vector<8x96xf32>
    %103 = tpu.matmul %102, %3, %cst_35 {dimension_numbers = #tpu.dot_dimension_numbers<[1], [0], [0], [1], [0, 0, 1, 1], [], []>} : vector<8x32xbf16>, vector<32x96xbf16>, vector<8x96xf32> -> vector<8x96xf32>
    %104 = vector.broadcast %4 : vector<1x96xf32> to vector<8x96xf32>
    %105 = arith.addf %103, %104 : vector<8x96xf32>
    %106 = arith.truncf %94 : vector<8x32xf32> to vector<8x32xbf16>
    %cst_36 = arith.constant dense<0.000000e+00> : vector<8x96xf32>
    %107 = tpu.matmul %106, %5, %cst_36 {dimension_numbers = #tpu.dot_dimension_numbers<[1], [0], [0], [1], [0, 0, 1, 1], [], []>} : vector<8x32xbf16>, vector<32x96xbf16>, vector<8x96xf32> -> vector<8x96xf32>
    %108 = vector.extract_strided_slice %105 {offsets = [0, 0], sizes = [8, 32], strides = [1, 1]} : vector<8x96xf32> to vector<8x32xf32>
    %109 = vector.extract_strided_slice %107 {offsets = [0, 0], sizes = [8, 32], strides = [1, 1]} : vector<8x96xf32> to vector<8x32xf32>
    %110 = arith.addf %108, %109 : vector<8x32xf32>
    %111 = arith.negf %110 : vector<8x32xf32>
    %112 = math.exp %111 : vector<8x32xf32>
    %cst_37 = arith.constant 1.000000e+00 : f32
    %113 = vector.broadcast %cst_37 : f32 to vector<8x32xf32>
    %114 = arith.addf %113, %112 : vector<8x32xf32>
    %115 = arith.divf %113, %114 : vector<8x32xf32>
    %116 = vector.extract_strided_slice %105 {offsets = [0, 32], sizes = [8, 32], strides = [1, 1]} : vector<8x96xf32> to vector<8x32xf32>
    %117 = vector.extract_strided_slice %107 {offsets = [0, 32], sizes = [8, 32], strides = [1, 1]} : vector<8x96xf32> to vector<8x32xf32>
    %118 = arith.addf %116, %117 : vector<8x32xf32>
    %119 = arith.negf %118 : vector<8x32xf32>
    %120 = math.exp %119 : vector<8x32xf32>
    %cst_38 = arith.constant 1.000000e+00 : f32
    %121 = vector.broadcast %cst_38 : f32 to vector<8x32xf32>
    %122 = arith.addf %121, %120 : vector<8x32xf32>
    %123 = arith.divf %121, %122 : vector<8x32xf32>
    %124 = vector.extract_strided_slice %105 {offsets = [0, 64], sizes = [8, 32], strides = [1, 1]} : vector<8x96xf32> to vector<8x32xf32>
    %125 = vector.extract_strided_slice %107 {offsets = [0, 64], sizes = [8, 32], strides = [1, 1]} : vector<8x96xf32> to vector<8x32xf32>
    %126 = vector.broadcast %6 : vector<1x32xf32> to vector<8x32xf32>
    %127 = arith.addf %125, %126 : vector<8x32xf32>
    %128 = arith.mulf %115, %127 : vector<8x32xf32>
    %129 = arith.addf %124, %128 : vector<8x32xf32>
    %130 = math.tanh %129 : vector<8x32xf32>
    %cst_39 = arith.constant 1.000000e+00 : f32
    %131 = vector.broadcast %cst_39 : f32 to vector<8x32xf32>
    %132 = arith.subf %131, %123 : vector<8x32xf32>
    %133 = arith.mulf %132, %130 : vector<8x32xf32>
    %134 = arith.mulf %123, %94 : vector<8x32xf32>
    %135 = arith.addf %133, %134 : vector<8x32xf32>
    %136 = vector.extract_strided_slice %11 {offsets = [0, 12], sizes = [8, 4], strides = [1, 1]} : vector<8x16xf32> to vector<8x4xf32>
    %137 = arith.truncf %136 : vector<8x4xf32> to vector<8x4xbf16>
    %cst_40 = arith.constant dense<0.000000e+00> : vector<8x32xf32>
    %138 = tpu.matmul %137, %1, %cst_40 {dimension_numbers = #tpu.dot_dimension_numbers<[1], [0], [0], [1], [0, 0, 1, 1], [], []>} : vector<8x4xbf16>, vector<4x32xbf16>, vector<8x32xf32> -> vector<8x32xf32>
    %139 = vector.broadcast %2 : vector<1x32xf32> to vector<8x32xf32>
    %140 = arith.addf %138, %139 : vector<8x32xf32>
    %cst_41 = arith.constant 0.000000e+00 : f32
    %141 = vector.broadcast %cst_41 : f32 to vector<8x32xf32>
    %142 = arith.maximumf %140, %141 : vector<8x32xf32>
    %143 = arith.truncf %142 : vector<8x32xf32> to vector<8x32xbf16>
    %cst_42 = arith.constant dense<0.000000e+00> : vector<8x96xf32>
    %144 = tpu.matmul %143, %3, %cst_42 {dimension_numbers = #tpu.dot_dimension_numbers<[1], [0], [0], [1], [0, 0, 1, 1], [], []>} : vector<8x32xbf16>, vector<32x96xbf16>, vector<8x96xf32> -> vector<8x96xf32>
    %145 = vector.broadcast %4 : vector<1x96xf32> to vector<8x96xf32>
    %146 = arith.addf %144, %145 : vector<8x96xf32>
    %147 = arith.truncf %135 : vector<8x32xf32> to vector<8x32xbf16>
    %cst_43 = arith.constant dense<0.000000e+00> : vector<8x96xf32>
    %148 = tpu.matmul %147, %5, %cst_43 {dimension_numbers = #tpu.dot_dimension_numbers<[1], [0], [0], [1], [0, 0, 1, 1], [], []>} : vector<8x32xbf16>, vector<32x96xbf16>, vector<8x96xf32> -> vector<8x96xf32>
    %149 = vector.extract_strided_slice %146 {offsets = [0, 0], sizes = [8, 32], strides = [1, 1]} : vector<8x96xf32> to vector<8x32xf32>
    %150 = vector.extract_strided_slice %148 {offsets = [0, 0], sizes = [8, 32], strides = [1, 1]} : vector<8x96xf32> to vector<8x32xf32>
    %151 = arith.addf %149, %150 : vector<8x32xf32>
    %152 = arith.negf %151 : vector<8x32xf32>
    %153 = math.exp %152 : vector<8x32xf32>
    %cst_44 = arith.constant 1.000000e+00 : f32
    %154 = vector.broadcast %cst_44 : f32 to vector<8x32xf32>
    %155 = arith.addf %154, %153 : vector<8x32xf32>
    %156 = arith.divf %154, %155 : vector<8x32xf32>
    %157 = vector.extract_strided_slice %146 {offsets = [0, 32], sizes = [8, 32], strides = [1, 1]} : vector<8x96xf32> to vector<8x32xf32>
    %158 = vector.extract_strided_slice %148 {offsets = [0, 32], sizes = [8, 32], strides = [1, 1]} : vector<8x96xf32> to vector<8x32xf32>
    %159 = arith.addf %157, %158 : vector<8x32xf32>
    %160 = arith.negf %159 : vector<8x32xf32>
    %161 = math.exp %160 : vector<8x32xf32>
    %cst_45 = arith.constant 1.000000e+00 : f32
    %162 = vector.broadcast %cst_45 : f32 to vector<8x32xf32>
    %163 = arith.addf %162, %161 : vector<8x32xf32>
    %164 = arith.divf %162, %163 : vector<8x32xf32>
    %165 = vector.extract_strided_slice %146 {offsets = [0, 64], sizes = [8, 32], strides = [1, 1]} : vector<8x96xf32> to vector<8x32xf32>
    %166 = vector.extract_strided_slice %148 {offsets = [0, 64], sizes = [8, 32], strides = [1, 1]} : vector<8x96xf32> to vector<8x32xf32>
    %167 = vector.broadcast %6 : vector<1x32xf32> to vector<8x32xf32>
    %168 = arith.addf %166, %167 : vector<8x32xf32>
    %169 = arith.mulf %156, %168 : vector<8x32xf32>
    %170 = arith.addf %165, %169 : vector<8x32xf32>
    %171 = math.tanh %170 : vector<8x32xf32>
    %cst_46 = arith.constant 1.000000e+00 : f32
    %172 = vector.broadcast %cst_46 : f32 to vector<8x32xf32>
    %173 = arith.subf %172, %164 : vector<8x32xf32>
    %174 = arith.mulf %173, %171 : vector<8x32xf32>
    %175 = arith.mulf %164, %135 : vector<8x32xf32>
    %176 = arith.addf %174, %175 : vector<8x32xf32>
    %177 = arith.truncf %176 : vector<8x32xf32> to vector<8x32xbf16>
    %cst_47 = arith.constant dense<0.000000e+00> : vector<8x96xf32>
    %178 = tpu.matmul %177, %5, %cst_47 {dimension_numbers = #tpu.dot_dimension_numbers<[1], [0], [0], [1], [0, 0, 1, 1], [], []>} : vector<8x32xbf16>, vector<32x96xbf16>, vector<8x96xf32> -> vector<8x96xf32>
    %179 = vector.extract_strided_slice %178 {offsets = [0, 0], sizes = [8, 32], strides = [1, 1]} : vector<8x96xf32> to vector<8x32xf32>
    %180 = vector.extract_strided_slice %178 {offsets = [0, 32], sizes = [8, 32], strides = [1, 1]} : vector<8x96xf32> to vector<8x32xf32>
    %181 = vector.extract_strided_slice %178 {offsets = [0, 64], sizes = [8, 32], strides = [1, 1]} : vector<8x96xf32> to vector<8x32xf32>
    %182 = vector.broadcast %6 : vector<1x32xf32> to vector<8x32xf32>
    %183 = arith.addf %181, %182 : vector<8x32xf32>
    %c0_48 = arith.constant 0 : index
    %c0_49 = arith.constant 0 : index
    %c0_50 = arith.constant 0 : index
    %184 = vector.load %arg9[%c0_48, %c0_49, %c0_50] : memref<2x8x96xf32, #tpu.memory_space<vmem>>, vector<1x8x96xf32>
    %185 = vector.shape_cast %184 : vector<1x8x96xf32> to vector<8x96xf32>
    %186 = vector.extract_strided_slice %185 {offsets = [0, 0], sizes = [8, 32], strides = [1, 1]} : vector<8x96xf32> to vector<8x32xf32>
    %187 = arith.addf %186, %179 : vector<8x32xf32>
    %188 = arith.negf %187 : vector<8x32xf32>
    %189 = math.exp %188 : vector<8x32xf32>
    %cst_51 = arith.constant 1.000000e+00 : f32
    %190 = vector.broadcast %cst_51 : f32 to vector<8x32xf32>
    %191 = arith.addf %190, %189 : vector<8x32xf32>
    %192 = arith.divf %190, %191 : vector<8x32xf32>
    %193 = vector.extract_strided_slice %185 {offsets = [0, 32], sizes = [8, 32], strides = [1, 1]} : vector<8x96xf32> to vector<8x32xf32>
    %194 = arith.addf %193, %180 : vector<8x32xf32>
    %195 = arith.negf %194 : vector<8x32xf32>
    %196 = math.exp %195 : vector<8x32xf32>
    %cst_52 = arith.constant 1.000000e+00 : f32
    %197 = vector.broadcast %cst_52 : f32 to vector<8x32xf32>
    %198 = arith.addf %197, %196 : vector<8x32xf32>
    %199 = arith.divf %197, %198 : vector<8x32xf32>
    %200 = vector.extract_strided_slice %185 {offsets = [0, 64], sizes = [8, 32], strides = [1, 1]} : vector<8x96xf32> to vector<8x32xf32>
    %201 = arith.mulf %192, %183 : vector<8x32xf32>
    %202 = arith.addf %200, %201 : vector<8x32xf32>
    %203 = math.tanh %202 : vector<8x32xf32>
    %cst_53 = arith.constant 1.000000e+00 : f32
    %204 = vector.broadcast %cst_53 : f32 to vector<8x32xf32>
    %205 = arith.subf %204, %199 : vector<8x32xf32>
    %206 = arith.mulf %205, %203 : vector<8x32xf32>
    %207 = arith.mulf %199, %176 : vector<8x32xf32>
    %208 = arith.addf %206, %207 : vector<8x32xf32>
    %c1 = arith.constant 1 : index
    %c0_54 = arith.constant 0 : index
    %c0_55 = arith.constant 0 : index
    %209 = vector.load %arg9[%c1, %c0_54, %c0_55] : memref<2x8x96xf32, #tpu.memory_space<vmem>>, vector<1x8x96xf32>
    %210 = vector.shape_cast %209 : vector<1x8x96xf32> to vector<8x96xf32>
    %211 = vector.extract_strided_slice %210 {offsets = [0, 0], sizes = [8, 32], strides = [1, 1]} : vector<8x96xf32> to vector<8x32xf32>
    %212 = arith.addf %211, %179 : vector<8x32xf32>
    %213 = arith.negf %212 : vector<8x32xf32>
    %214 = math.exp %213 : vector<8x32xf32>
    %cst_56 = arith.constant 1.000000e+00 : f32
    %215 = vector.broadcast %cst_56 : f32 to vector<8x32xf32>
    %216 = arith.addf %215, %214 : vector<8x32xf32>
    %217 = arith.divf %215, %216 : vector<8x32xf32>
    %218 = vector.extract_strided_slice %210 {offsets = [0, 32], sizes = [8, 32], strides = [1, 1]} : vector<8x96xf32> to vector<8x32xf32>
    %219 = arith.addf %218, %180 : vector<8x32xf32>
    %220 = arith.negf %219 : vector<8x32xf32>
    %221 = math.exp %220 : vector<8x32xf32>
    %cst_57 = arith.constant 1.000000e+00 : f32
    %222 = vector.broadcast %cst_57 : f32 to vector<8x32xf32>
    %223 = arith.addf %222, %221 : vector<8x32xf32>
    %224 = arith.divf %222, %223 : vector<8x32xf32>
    %225 = vector.extract_strided_slice %210 {offsets = [0, 64], sizes = [8, 32], strides = [1, 1]} : vector<8x96xf32> to vector<8x32xf32>
    %226 = arith.mulf %217, %183 : vector<8x32xf32>
    %227 = arith.addf %225, %226 : vector<8x32xf32>
    %228 = math.tanh %227 : vector<8x32xf32>
    %cst_58 = arith.constant 1.000000e+00 : f32
    %229 = vector.broadcast %cst_58 : f32 to vector<8x32xf32>
    %230 = arith.subf %229, %224 : vector<8x32xf32>
    %231 = arith.mulf %230, %228 : vector<8x32xf32>
    %232 = arith.mulf %224, %176 : vector<8x32xf32>
    %233 = arith.addf %231, %232 : vector<8x32xf32>
    %234 = tpu.concatenate %208, %233 in 0 : vector<8x32xf32>, vector<8x32xf32> -> vector<16x32xf32>
    %235 = arith.truncf %234 : vector<16x32xf32> to vector<16x32xbf16>
    %cst_59 = arith.constant dense<0.000000e+00> : vector<16x4xf32>
    %236 = tpu.matmul %235, %7, %cst_59 {dimension_numbers = #tpu.dot_dimension_numbers<[1], [0], [0], [1], [0, 0, 1, 1], [], []>} : vector<16x32xbf16>, vector<32x4xbf16>, vector<16x4xf32> -> vector<16x4xf32>
    %237 = vector.broadcast %8 : vector<1x4xf32> to vector<16x4xf32>
    %238 = arith.addf %236, %237 : vector<16x4xf32>
    %cst_60 = arith.constant 0.000000e+00 : f32
    %239 = vector.broadcast %cst_60 : f32 to vector<8x120xf32>
    %c0_61 = arith.constant 0 : index
    %c8 = arith.constant 8 : index
    %240 = vector.load %arg12[%c0_61, %c8] : memref<8x128xf32, #tpu.memory_space<vmem>>, vector<8x120xf32>
    tpu.vector_store %arg12[%c0_61, %c8], %239 {strides = array<i32>} : memref<8x128xf32, #tpu.memory_space<vmem>>, vector<8x120xf32>,
    %241 = vector.extract_strided_slice %238 {offsets = [0, 0], sizes = [8, 4], strides = [1, 1]} : vector<16x4xf32> to vector<8x4xf32>
    %242 = vector.broadcast %0 : vector<8x1xf32> to vector<8x4xf32>
    %243 = arith.addf %241, %242 : vector<8x4xf32>
    %c0_62 = arith.constant 0 : index
    %c0_63 = arith.constant 0 : index
    %244 = vector.load %arg12[%c0_62, %c0_63] : memref<8x128xf32, #tpu.memory_space<vmem>>, vector<8x4xf32>
    tpu.vector_store %arg12[%c0_62, %c0_63], %243 {strides = array<i32>} : memref<8x128xf32, #tpu.memory_space<vmem>>, vector<8x4xf32>,
    %245 = vector.extract_strided_slice %238 {offsets = [8, 0], sizes = [8, 4], strides = [1, 1]} : vector<16x4xf32> to vector<8x4xf32>
    %246 = vector.broadcast %0 : vector<8x1xf32> to vector<8x4xf32>
    %247 = arith.addf %245, %246 : vector<8x4xf32>
    %c0_64 = arith.constant 0 : index
    %c4 = arith.constant 4 : index
    %248 = vector.load %arg12[%c0_64, %c4] : memref<8x128xf32, #tpu.memory_space<vmem>>, vector<8x4xf32>
    tpu.vector_store %arg12[%c0_64, %c4], %247 {strides = array<i32>} : memref<8x128xf32, #tpu.memory_space<vmem>>, vector<8x4xf32>,
    return
  }
  func.func @transform_0(%arg0: i32) -> (i32, i32) {
    %c0_i32 = arith.constant 0 : i32
    %c0_i32_0 = arith.constant 0 : i32
    return %arg0, %c0_i32 : i32, i32
  }
  func.func @transform_1(%arg0: i32) -> (i32, i32) {
    %c0_i32 = arith.constant 0 : i32
    %c0_i32_0 = arith.constant 0 : i32
    return %arg0, %c0_i32 : i32, i32
  }
  func.func @transform_2(%arg0: i32) -> (i32, i32) {
    %c0_i32 = arith.constant 0 : i32
    %c0_i32_0 = arith.constant 0 : i32
    %c0_i32_1 = arith.constant 0 : i32
    return %c0_i32, %c0_i32_0 : i32, i32
  }
  func.func @transform_3(%arg0: i32) -> (i32, i32) {
    %c0_i32 = arith.constant 0 : i32
    %c0_i32_0 = arith.constant 0 : i32
    %c0_i32_1 = arith.constant 0 : i32
    return %c0_i32, %c0_i32_0 : i32, i32
  }
  func.func @transform_4(%arg0: i32) -> (i32, i32) {
    %c0_i32 = arith.constant 0 : i32
    %c0_i32_0 = arith.constant 0 : i32
    %c0_i32_1 = arith.constant 0 : i32
    return %c0_i32, %c0_i32_0 : i32, i32
  }
  func.func @transform_5(%arg0: i32) -> (i32, i32) {
    %c0_i32 = arith.constant 0 : i32
    %c0_i32_0 = arith.constant 0 : i32
    %c0_i32_1 = arith.constant 0 : i32
    return %c0_i32, %c0_i32_0 : i32, i32
  }
  func.func @transform_6(%arg0: i32) -> (i32, i32) {
    %c0_i32 = arith.constant 0 : i32
    %c0_i32_0 = arith.constant 0 : i32
    %c0_i32_1 = arith.constant 0 : i32
    return %c0_i32, %c0_i32_0 : i32, i32
  }
  func.func @transform_7(%arg0: i32) -> (i32, i32) {
    %c0_i32 = arith.constant 0 : i32
    %c0_i32_0 = arith.constant 0 : i32
    %c0_i32_1 = arith.constant 0 : i32
    return %c0_i32, %c0_i32_0 : i32, i32
  }
  func.func @transform_8(%arg0: i32) -> (i32, i32, i32) {
    %c0_i32 = arith.constant 0 : i32
    %c0_i32_0 = arith.constant 0 : i32
    %c0_i32_1 = arith.constant 0 : i32
    %c0_i32_2 = arith.constant 0 : i32
    return %c0_i32, %c0_i32_0, %c0_i32_1 : i32, i32, i32
  }
  func.func @transform_9(%arg0: i32) -> (i32, i32) {
    %c0_i32 = arith.constant 0 : i32
    %c0_i32_0 = arith.constant 0 : i32
    %c0_i32_1 = arith.constant 0 : i32
    return %c0_i32, %c0_i32_0 : i32, i32
  }
  func.func @transform_10(%arg0: i32) -> (i32, i32) {
    %c0_i32 = arith.constant 0 : i32
    %c0_i32_0 = arith.constant 0 : i32
    %c0_i32_1 = arith.constant 0 : i32
    return %c0_i32, %c0_i32_0 : i32, i32
  }
  func.func @transform_11(%arg0: i32) -> (i32, i32) {
    %c0_i32 = arith.constant 0 : i32
    %c0_i32_0 = arith.constant 0 : i32
    return %arg0, %c0_i32 : i32, i32
  }
}

</mosaic_0001>

<llo_original>
// kernel: _lambda_.1
$region0: #{_lambda_.1}
  #allocation0 [shape = 'u32[]', space=smem, size = 0x4, offset = 0x4, fixed_abs, tag = 'smem constant byte address 0x4 - core index']
  #allocation1 [shape = 'u32[72,128]{1,0:T(1,128)}', space=vmem, size = 0x9000, scoped, tag = 'internal scratch']
  %s0 = inlined_call_operand.vmem [shape: f32[16,16], index: 0, kind: input, shape index: {}]
  %s1 = inlined_call_operand.vmem [shape: f32[16,1], index: 1, kind: input, shape index: {}]
  %s2 = inlined_call_operand.vmem [shape: bf16[4,32], index: 2, kind: input, shape index: {}]
  %s3 = inlined_call_operand.vmem [shape: f32[1,32], index: 3, kind: input, shape index: {}]
  %s4 = inlined_call_operand.hbm [shape: bf16[32,96], index: 4, kind: input, shape index: {}]
  %s5 = inlined_call_operand.vmem [shape: f32[1,96], index: 5, kind: input, shape index: {}]
  %s6 = inlined_call_operand.vmem [shape: bf16[32,96], index: 6, kind: input, shape index: {}]
  %s7 = inlined_call_operand.vmem [shape: f32[1,32], index: 7, kind: input, shape index: {}]
  %s8 = inlined_call_operand.vmem [shape: f32[2,8,96], index: 8, kind: input, shape index: {}]
  %s9 = inlined_call_operand.vmem [shape: bf16[32,4], index: 9, kind: input, shape index: {}]
  %s10 = inlined_call_operand.vmem [shape: f32[1,4], index: 10, kind: input, shape index: {}]
  %s11 = inlined_call_operand.vmem [shape: f32[16,128], index: 11, kind: output, shape index: {}]
  %s12 = sld [smem:[#allocation0]]
  $region81: #{_lambda_.1} parent=0
    _
  %s14 = ssub.s32 1, %s12
  %s15 = scalar_select 0, %s14, %s12
  $region1: #{_lambda_.1} parent=0
    #allocation2 [shape = 'u8[8192]{0}', space=vmem, size = 0x2000, scoped, tag = 'input window, operand 4, single buffered']
    #allocation3 [shape = 's32[2]{0}', space=sflag, size = 0x8, scoped, tag = 'scoped memory for _lambda_.1']
    %16 = vsyncpa [#allocation3], 0
    loop: start=0, step=1, limit=4
    $region2: #{_lambda_.1} parent=1 // loop_pre_header
      _
    $region3: #{_lambda_.1} parent=1 // loop_header
      %s18 = sphi 0, %s22
      %p19 = scmp.ge.s32.totalorder %s18, 4
      %s28 = sphi 0, %s30
      %s31 = sphi 0, %s28
      %s32 = sphi 0, %s31
      %s48 = sphi 0, %s32
      %s54 = sphi 0, %s56
      %s57 = sphi 0, %s54
      %s58 = sphi 0, %s57
      %s74 = sphi 0, %s58
      %s78 = sphi 0, %s78
      %s80 = sphi 0, %s78
      %s81 = sphi 0, %s80
      %s95 = sphi 0, %s81
      %s99 = sphi 0, %s99
      %s101 = sphi 0, %s99
      %s102 = sphi 0, %s101
      %s116 = sphi 0, %s102
      %s120 = sphi 0, %s120
      %s122 = sphi 0, %s120
      %s123 = sphi 0, %s122
      %s137 = sphi 0, %s123
      %s141 = sphi 0, %s141
      %s143 = sphi 0, %s141
      %s144 = sphi 0, %s143
      %s158 = sphi 0, %s144
      %s162 = sphi 0, %s162
      %s164 = sphi 0, %s162
      %s165 = sphi 0, %s164
      %s179 = sphi 0, %s165
      %s183 = sphi 0, %s183
      %s185 = sphi 0, %s183
      %s186 = sphi 0, %s185
      %s200 = sphi 0, %s186
      %s204 = sphi 0, %s204
      %s206 = sphi 0, %s204
      %s207 = sphi 0, %s206
      %s221 = sphi 0, %s207
      %s225 = sphi 0, %s225
      %s227 = sphi 0, %s225
      %s228 = sphi 0, %s227
      %s242 = sphi 0, %s228
      %s246 = sphi 0, %s246
      %s248 = sphi 0, %s246
      %s249 = sphi 0, %s248
      %s263 = sphi 0, %s249
      %s269 = sphi 0, %s271
      %s272 = sphi 0, %s269
      %s273 = sphi 0, %s272
      %s289 = sphi 0, %s273
    $region4: #{_lambda_.1} parent=1 // loop_header_branch
      %21 = sbr.rel (%p19) target = $region8
    $region5: #{_lambda_.1} parent=1 // loop_body
      %s23 = ssub.s32 %s18, 1
      %s24 = ssub.s32 %s18, 2
      %s25 = sadd.s32 %s18, 1
      %s26 = ssub.s32 %s18, %s25
      %p27 = scmp.eq.s32.totalorder %s26, 0
      %s29 = sadd.s32 %s28, 1
      %s30 = scalar_select %p27, %s28, %s29
      %p33 = pneg %p27
      %p34 = scmp.eq.s32.totalorder %s18, 1
      %p35 = por %p33, %p34
      %p36 = scmp.ne.s32.totalorder %s28, %s31
      %p37 = scmp.eq.s32.totalorder %s18, 0
      %p38 = por %p36, %p37
      %p39 = scmp.ne.s32.totalorder %s28, %s31
      %p40 = scmp.eq.s32.totalorder %s23, 1
      %p41 = por %p39, %p40
      %p42 = scmp.ne.s32.totalorder %s31, %s32
      %p43 = scmp.eq.s32.totalorder %s23, 0
      %p44 = por %p42, %p43
      %p45 = scmp.ne.s32.totalorder %s31, %s32
      %p46 = scmp.eq.s32.totalorder %s24, 1
      %p47 = por %p45, %p46
      %p49 = scmp.ne.s32.totalorder %s32, %s48
      %p50 = scmp.eq.s32.totalorder %s24, 0
      %p51 = por %p49, %p50
      %s52 = ssub.s32 %s18, %s25
      %p53 = scmp.eq.s32.totalorder %s52, 0
      %s55 = sadd.s32 %s54, 1
      %s56 = scalar_select %p53, %s54, %s55
      %p59 = pneg %p53
      %p60 = scmp.eq.s32.totalorder %s18, 1
      %p61 = por %p59, %p60
      %p62 = scmp.ne.s32.totalorder %s54, %s57
      %p63 = scmp.eq.s32.totalorder %s18, 0
      %p64 = por %p62, %p63
      %p65 = scmp.ne.s32.totalorder %s54, %s57
      %p66 = scmp.eq.s32.totalorder %s23, 1
      %p67 = por %p65, %p66
      %p68 = scmp.ne.s32.totalorder %s57, %s58
      %p69 = scmp.eq.s32.totalorder %s23, 0
      %p70 = por %p68, %p69
      %p71 = scmp.ne.s32.totalorder %s57, %s58
      %p72 = scmp.eq.s32.totalorder %s24, 1
      %p73 = por %p71, %p72
      %p75 = scmp.ne.s32.totalorder %s58, %s74
      %p76 = scmp.eq.s32.totalorder %s24, 0
      %p77 = por %p75, %p76
      %s79 = sadd.s32 %s78, 1
      %p82 = scmp.eq.s32.totalorder %s18, 1
      %p83 = scmp.ne.s32.totalorder %s78, %s80
      %p84 = scmp.eq.s32.totalorder %s18, 0
      %p85 = por %p83, %p84
      %p86 = scmp.ne.s32.totalorder %s78, %s80
      %p87 = scmp.eq.s32.totalorder %s23, 1
      %p88 = por %p86, %p87
      %p89 = scmp.ne.s32.totalorder %s80, %s81
      %p90 = scmp.eq.s32.totalorder %s23, 0
      %p91 = por %p89, %p90
      %p92 = scmp.ne.s32.totalorder %s80, %s81
      %p93 = scmp.eq.s32.totalorder %s24, 1
      %p94 = por %p92, %p93
      %p96 = scmp.ne.s32.totalorder %s81, %s95
      %p97 = scmp.eq.s32.totalorder %s24, 0
      %p98 = por %p96, %p97
      %s100 = sadd.s32 %s99, 1
      %p103 = scmp.eq.s32.totalorder %s18, 1
      %p104 = scmp.ne.s32.totalorder %s99, %s101
      %p105 = scmp.eq.s32.totalorder %s18, 0
      %p106 = por %p104, %p105
      %p107 = scmp.ne.s32.totalorder %s99, %s101
      %p108 = scmp.eq.s32.totalorder %s23, 1
      %p109 = por %p107, %p108
      %p110 = scmp.ne.s32.totalorder %s101, %s102
      %p111 = scmp.eq.s32.totalorder %s23, 0
      %p112 = por %p110, %p111
      %p113 = scmp.ne.s32.totalorder %s101, %s102
      %p114 = scmp.eq.s32.totalorder %s24, 1
      %p115 = por %p113, %p114
      %p117 = scmp.ne.s32.totalorder %s102, %s116
      %p118 = scmp.eq.s32.totalorder %s24, 0
      %p119 = por %p117, %p118
      %s121 = sadd.s32 %s120, 1
      %p124 = scmp.eq.s32.totalorder %s18, 1
      %p125 = scmp.ne.s32.totalorder %s120, %s122
      %p126 = scmp.eq.s32.totalorder %s18, 0
      %p127 = por %p125, %p126
      %p128 = scmp.ne.s32.totalorder %s120, %s122
      %p129 = scmp.eq.s32.totalorder %s23, 1
      %p130 = por %p128, %p129
      %p131 = scmp.ne.s32.totalorder %s122, %s123
      %p132 = scmp.eq.s32.totalorder %s23, 0
      %p133 = por %p131, %p132
      %p134 = scmp.ne.s32.totalorder %s122, %s123
      %p135 = scmp.eq.s32.totalorder %s24, 1
      %p136 = por %p134, %p135
      %p138 = scmp.ne.s32.totalorder %s123, %s137
      %p139 = scmp.eq.s32.totalorder %s24, 0
      %p140 = por %p138, %p139
      %s142 = sadd.s32 %s141, 1
      %p145 = scmp.eq.s32.totalorder %s18, 1
      %p146 = scmp.ne.s32.totalorder %s141, %s143
      %p147 = scmp.eq.s32.totalorder %s18, 0
      %p148 = por %p146, %p147
      %p149 = scmp.ne.s32.totalorder %s141, %s143
      %p150 = scmp.eq.s32.totalorder %s23, 1
      %p151 = por %p149, %p150
      %p152 = scmp.ne.s32.totalorder %s143, %s144
      %p153 = scmp.eq.s32.totalorder %s23, 0
      %p154 = por %p152, %p153
      %p155 = scmp.ne.s32.totalorder %s143, %s144
      %p156 = scmp.eq.s32.totalorder %s24, 1
      %p157 = por %p155, %p156
      %p159 = scmp.ne.s32.totalorder %s144, %s158
      %p160 = scmp.eq.s32.totalorder %s24, 0
      %p161 = por %p159, %p160
      %s163 = sadd.s32 %s162, 1
      %p166 = scmp.eq.s32.totalorder %s18, 1
      %p167 = scmp.ne.s32.totalorder %s162, %s164
      %p168 = scmp.eq.s32.totalorder %s18, 0
      %p169 = por %p167, %p168
      %p170 = scmp.ne.s32.totalorder %s162, %s164
      %p171 = scmp.eq.s32.totalorder %s23, 1
      %p172 = por %p170, %p171
      %p173 = scmp.ne.s32.totalorder %s164, %s165
      %p174 = scmp.eq.s32.totalorder %s23, 0
      %p175 = por %p173, %p174
      %p176 = scmp.ne.s32.totalorder %s164, %s165
      %p177 = scmp.eq.s32.totalorder %s24, 1
      %p178 = por %p176, %p177
      %p180 = scmp.ne.s32.totalorder %s165, %s179
      %p181 = scmp.eq.s32.totalorder %s24, 0
      %p182 = por %p180, %p181
      %s184 = sadd.s32 %s183, 1
      %p187 = scmp.eq.s32.totalorder %s18, 1
      %p188 = scmp.ne.s32.totalorder %s183, %s185
      %p189 = scmp.eq.s32.totalorder %s18, 0
      %p190 = por %p188, %p189
      %p191 = scmp.ne.s32.totalorder %s183, %s185
      %p192 = scmp.eq.s32.totalorder %s23, 1
      %p193 = por %p191, %p192
      %p194 = scmp.ne.s32.totalorder %s185, %s186
      %p195 = scmp.eq.s32.totalorder %s23, 0
      %p196 = por %p194, %p195
      %p197 = scmp.ne.s32.totalorder %s185, %s186
      %p198 = scmp.eq.s32.totalorder %s24, 1
      %p199 = por %p197, %p198
      %p201 = scmp.ne.s32.totalorder %s186, %s200
      %p202 = scmp.eq.s32.totalorder %s24, 0
      %p203 = por %p201, %p202
      %s205 = sadd.s32 %s204, 1
      %p208 = scmp.eq.s32.totalorder %s18, 1
      %p209 = scmp.ne.s32.totalorder %s204, %s206
      %p210 = scmp.eq.s32.totalorder %s18, 0
      %p211 = por %p209, %p210
      %p212 = scmp.ne.s32.totalorder %s204, %s206
      %p213 = scmp.eq.s32.totalorder %s23, 1
      %p214 = por %p212, %p213
      %p215 = scmp.ne.s32.totalorder %s206, %s207
      %p216 = scmp.eq.s32.totalorder %s23, 0
      %p217 = por %p215, %p216
      %p218 = scmp.ne.s32.totalorder %s206, %s207
      %p219 = scmp.eq.s32.totalorder %s24, 1
      %p220 = por %p218, %p219
      %p222 = scmp.ne.s32.totalorder %s207, %s221
      %p223 = scmp.eq.s32.totalorder %s24, 0
      %p224 = por %p222, %p223
      %s226 = sadd.s32 %s225, 1
      %p229 = scmp.eq.s32.totalorder %s18, 1
      %p230 = scmp.ne.s32.totalorder %s225, %s227
      %p231 = scmp.eq.s32.totalorder %s18, 0
      %p232 = por %p230, %p231
      %p233 = scmp.ne.s32.totalorder %s225, %s227
      %p234 = scmp.eq.s32.totalorder %s23, 1
      %p235 = por %p233, %p234
      %p236 = scmp.ne.s32.totalorder %s227, %s228
      %p237 = scmp.eq.s32.totalorder %s23, 0
      %p238 = por %p236, %p237
      %p239 = scmp.ne.s32.totalorder %s227, %s228
      %p240 = scmp.eq.s32.totalorder %s24, 1
      %p241 = por %p239, %p240
      %p243 = scmp.ne.s32.totalorder %s228, %s242
      %p244 = scmp.eq.s32.totalorder %s24, 0
      %p245 = por %p243, %p244
      %s247 = sadd.s32 %s246, 1
      %p250 = scmp.eq.s32.totalorder %s18, 1
      %p251 = scmp.ne.s32.totalorder %s246, %s248
      %p252 = scmp.eq.s32.totalorder %s18, 0
      %p253 = por %p251, %p252
      %p254 = scmp.ne.s32.totalorder %s246, %s248
      %p255 = scmp.eq.s32.totalorder %s23, 1
      %p256 = por %p254, %p255
      %p257 = scmp.ne.s32.totalorder %s248, %s249
      %p258 = scmp.eq.s32.totalorder %s23, 0
      %p259 = por %p257, %p258
      %p260 = scmp.ne.s32.totalorder %s248, %s249
      %p261 = scmp.eq.s32.totalorder %s24, 1
      %p262 = por %p260, %p261
      %p264 = scmp.ne.s32.totalorder %s249, %s263
      %p265 = scmp.eq.s32.totalorder %s24, 0
      %p266 = por %p264, %p265
      %s267 = ssub.s32 %s18, %s25
      %p268 = scmp.eq.s32.totalorder %s267, 0
      %s270 = sadd.s32 %s269, 1
      %s271 = scalar_select %p268, %s269, %s270
      %p274 = pneg %p268
      %p275 = scmp.eq.s32.totalorder %s18, 1
      %p276 = por %p274, %p275
      %p277 = scmp.ne.s32.totalorder %s269, %s272
      %p278 = scmp.eq.s32.totalorder %s18, 0
      %p279 = por %p277, %p278
      %p280 = scmp.ne.s32.totalorder %s269, %s272
      %p281 = scmp.eq.s32.totalorder %s23, 1
      %p282 = por %p280, %p281
      %p283 = scmp.ne.s32.totalorder %s272, %s273
      %p284 = scmp.eq.s32.totalorder %s23, 0
      %p285 = por %p283, %p284
      %p286 = scmp.ne.s32.totalorder %s272, %s273
      %p287 = scmp.eq.s32.totalorder %s24, 1
      %p288 = por %p286, %p287
      %p290 = scmp.ne.s32.totalorder %s273, %s289
      %p291 = scmp.eq.s32.totalorder %s24, 0
      %p292 = por %p290, %p291
      %p293 = scmp.le.s32.totalorder 1, %s18
      %p294 = scmp.lt.s32.totalorder %s18, 3
      %p295 = pnand %p293, %p294
      %p296 = pneg %p295
      // Predicated region
      $region9: #{_lambda_.1} parent=5 // pred_check
        _
      $region10: #{_lambda_.1} parent=5 // pred_check_branch
        %298 = sbr.rel (%p295) target = $region12
      $region11: #{_lambda_.1} parent=5 // pred_region
        %s299 = ssub.s32 %s18, 1
        // Predicated region
        $region13: #{_lambda_.1} parent=11 // pred_check
          %p300 = pneg %p91
        $region14: #{_lambda_.1} parent=11 // pred_check_branch
          %302 = sbr.rel (%p300) target = $region16
        $region15: #{_lambda_.1} parent=11 // pred_region
          _
        $region16: #{_lambda_.1} parent=11 // pred_fallthru
          _
        // Predicated region
        $region17: #{_lambda_.1} parent=11 // pred_check
          %p303 = pneg %p112
        $region18: #{_lambda_.1} parent=11 // pred_check_branch
          %305 = sbr.rel (%p303) target = $region20
        $region19: #{_lambda_.1} parent=11 // pred_region
          _
        $region20: #{_lambda_.1} parent=11 // pred_fallthru
          _
        // Predicated region
        $region21: #{_lambda_.1} parent=11 // pred_check
          %p306 = pneg %p133
        $region22: #{_lambda_.1} parent=11 // pred_check_branch
          %308 = sbr.rel (%p306) target = $region24
        $region23: #{_lambda_.1} parent=11 // pred_region
          %310 = vsyncadd [#allocation3], 0
          %s311 = sshll.u32 %s4, 4
          %s312 = int_to_ptr.hbm [resolvable:$true] %s311
          %s313 = sshll.u32 [#allocation2], 4
          %s314 = int_to_ptr.vmem [resolvable:$true] %s313
          %319 = dma.hbm_to_vmem [thread:$0]  %s312, 256, %s314, [#allocation3], 64, 64, 4
        $region24: #{_lambda_.1} parent=11 // pred_fallthru
          _
        // Predicated region
        $region25: #{_lambda_.1} parent=11 // pred_check
          %p320 = pneg %p154
        $region26: #{_lambda_.1} parent=11 // pred_check_branch
          %322 = sbr.rel (%p320) target = $region28
        $region27: #{_lambda_.1} parent=11 // pred_region
          _
        $region28: #{_lambda_.1} parent=11 // pred_fallthru
          _
        // Predicated region
        $region29: #{_lambda_.1} parent=11 // pred_check
          %p323 = pneg %p175
        $region30: #{_lambda_.1} parent=11 // pred_check_branch
          %325 = sbr.rel (%p323) target = $region32
        $region31: #{_lambda_.1} parent=11 // pred_region
          _
        $region32: #{_lambda_.1} parent=11 // pred_fallthru
          _
        // Predicated region
        $region33: #{_lambda_.1} parent=11 // pred_check
          %p326 = pneg %p196
        $region34: #{_lambda_.1} parent=11 // pred_check_branch
          %328 = sbr.rel (%p326) target = $region36
        $region35: #{_lambda_.1} parent=11 // pred_region
          _
        $region36: #{_lambda_.1} parent=11 // pred_fallthru
          _
        // Predicated region
        $region37: #{_lambda_.1} parent=11 // pred_check
          %p329 = pneg %p217
        $region38: #{_lambda_.1} parent=11 // pred_check_branch
          %331 = sbr.rel (%p329) target = $region40
        $region39: #{_lambda_.1} parent=11 // pred_region
          _
        $region40: #{_lambda_.1} parent=11 // pred_fallthru
          _
        // Predicated region
        $region41: #{_lambda_.1} parent=11 // pred_check
          %p332 = pneg %p238
        $region42: #{_lambda_.1} parent=11 // pred_check_branch
          %334 = sbr.rel (%p332) target = $region44
        $region43: #{_lambda_.1} parent=11 // pred_region
          _
        $region44: #{_lambda_.1} parent=11 // pred_fallthru
          _
        // Predicated region
        $region45: #{_lambda_.1} parent=11 // pred_check
          %p335 = pneg %p259
        $region46: #{_lambda_.1} parent=11 // pred_check_branch
          %337 = sbr.rel (%p335) target = $region48
        $region47: #{_lambda_.1} parent=11 // pred_region
          _
        $region48: #{_lambda_.1} parent=11 // pred_fallthru
          _
      $region12: #{_lambda_.1} parent=5 // pred_fallthru
        _
      %p338 = scmp.lt.s32.totalorder %s18, 2
      // Predicated region
      $region49: #{_lambda_.1} parent=5 // pred_check
        %p339 = pneg %p338
      $region50: #{_lambda_.1} parent=5 // pred_check_branch
        %341 = sbr.rel (%p339) target = $region52
      $region51: #{_lambda_.1} parent=5 // pred_region
        // Predicated region
        $region53: #{_lambda_.1} parent=51 // pred_check
          %p342 = pneg %p38
        $region54: #{_lambda_.1} parent=51 // pred_check_branch
          %344 = sbr.rel (%p342) target = $region56
        $region55: #{_lambda_.1} parent=51 // pred_region
          %p345 = scmp.lt.s32.totalorder %s18, 1
          %s346 = scalar_select %p345, %s18, 1
          %s347 = smul.addr %s346, 8
          %s348 = scalar_lea.vmem %s0, %s347
        $region56: #{_lambda_.1} parent=51 // pred_fallthru
          _
        // Predicated region
        $region57: #{_lambda_.1} parent=51 // pred_check
          %p349 = pneg %p64
        $region58: #{_lambda_.1} parent=51 // pred_check_branch
          %351 = sbr.rel (%p349) target = $region60
        $region59: #{_lambda_.1} parent=51 // pred_region
          %p352 = scmp.lt.s32.totalorder %s18, 1
          %s353 = scalar_select %p352, %s18, 1
          %s354 = smul.addr %s353, 8
          %s355 = scalar_lea.vmem %s1, %s354
        $region60: #{_lambda_.1} parent=51 // pred_fallthru
          _
      $region52: #{_lambda_.1} parent=5 // pred_fallthru
        _
      %p356 = scmp.le.s32.totalorder 1, %s18
      %p357 = scmp.lt.s32.totalorder %s18, 3
      %p358 = pnand %p356, %p357
      %p359 = pneg %p358
      // Predicated region
      $region61: #{_lambda_.1} parent=5 // pred_check
        _
      $region62: #{_lambda_.1} parent=5 // pred_check_branch
        %361 = sbr.rel (%p358) target = $region64
      $region63: #{_lambda_.1} parent=5 // pred_region
        %s362 = ssub.s32 %s18, 1
        // Predicated region
        $region65: #{_lambda_.1} parent=63 // pred_check
          %p363 = pneg %p133
        $region66: #{_lambda_.1} parent=63 // pred_check_branch
          %365 = sbr.rel (%p363) target = $region68
        $region67: #{_lambda_.1} parent=63 // pred_region
          %367 = dma.done [#allocation3], 256
        $region68: #{_lambda_.1} parent=63 // pred_fallthru
          _
        %p368 = scmp.lt.s32.totalorder %s23, 1
        %s369 = scalar_select %p368, %s23, 1
        %s370 = smul.addr %s369, 8
        %s371 = scalar_lea.vmem %s0, %s370
        %p372 = pneg %p44
        %p373 = pneg %p41
        %p374 = scmp.lt.s32.totalorder %s23, 1
        %s375 = scalar_select %p374, %s23, 1
        %s376 = smul.addr %s375, 8
        %s377 = scalar_lea.vmem %s1, %s376
        %p378 = pneg %p70
        %p379 = pneg %p67
        %p380 = pneg %p91
        %p381 = pneg %p88
        %p382 = pneg %p112
        %p383 = pneg %p109
        %p384 = pneg %p133
        %p385 = pneg %p130
        %p386 = pneg %p154
        %p387 = pneg %p151
        %p388 = pneg %p175
        %p389 = pneg %p172
        %p390 = pneg %p196
        %p391 = pneg %p193
        %p392 = pneg %p217
        %p393 = pneg %p214
        %p394 = pneg %p238
        %p395 = pneg %p235
        %p396 = pneg %p259
        %p397 = pneg %p256
        %p398 = pneg %p285
        %p399 = pneg %p282
        %p400 = scmp.lt.s32.totalorder %s23, 1
        %s401 = scalar_select %p400, %s23, 1
        %s402 = smul.addr %s401, 8
        %s403 = scalar_lea.vmem %s11, %s402
        %p404 = scmp.lt.s32.totalorder %s23, 1
        %s405 = scalar_select %p404, %s23, 1
        %s406 = smul.addr %s405, 8
        %s407 = scalar_lea.vmem %s0, %s406
        %p408 = scmp.lt.s32.totalorder %s23, 1
        %s409 = scalar_select %p408, %s23, 1
        %s410 = smul.addr %s409, 8
        %s411 = scalar_lea.vmem %s1, %s410
        %p412 = scmp.lt.s32.totalorder %s23, 1
        %s413 = scalar_select %p412, %s23, 1
        %s414 = smul.addr %s413, 8
        %s415 = scalar_lea.vmem %s11, %s414
        %v417 = vld [vmem:[%s411] sm:$0xff]
        %v418 = vld [vmem:[%s2] sm:$0x3]
        %v419 = vld [vmem:[%s3] sm:$0x1]
        %v420 = vld [vmem:[#allocation2] sm:$0xf]
        %v421 = vld [vmem:[#allocation2 + $0x4] sm:$0xf]
        %v422 = vld [vmem:[#allocation2 + $0x8] sm:$0xf]
        %v423 = vld [vmem:[#allocation2 + $0xc] sm:$0xf]
        %v424 = vld [vmem:[%s5] sm:$0x1]
        %v425 = vld [vmem:[%s6] sm:$0xf]
        %v426 = vld [vmem:[%s6 + $0x4] sm:$0xf]
        %v427 = vld [vmem:[%s6 + $0x8] sm:$0xf]
        %v428 = vld [vmem:[%s6 + $0xc] sm:$0xf]
        %v429 = vld [vmem:[%s7] sm:$0x1]
        %v430 = vld [vmem:[%s9] sm:$0xf]
        %v431 = vld [vmem:[%s9 + $0x4] sm:$0xf]
        %v432 = vld [vmem:[%s9 + $0x8] sm:$0xf]
        %v433 = vld [vmem:[%s9 + $0xc] sm:$0xf]
        %v434 = vld [vmem:[%s10] sm:$0x1]
        %v435 = vld [vmem:[%s407] sm:$0xff]
        %437 = vset.pattern.permute.xlu0 0
        %438 = vperm.xlu0 %437, %v417
        %v439 = vpop.permute.xlu0 %438
        %v441 = vsub.f32 %v435, %v439
        %v442 = vpack.c.bf16 %v441, %v441
        %v444 = vperm.slane %v419, 0
        %vm446 = vcmask 31744
        %v448 = vsel %vm446, %v442, 0
        %vm450 = vcmask 1041408
        %v452 = vsel %vm450, %v418, 0
        %454 = vmatpush.bf16.msra.mxu0 0
        %455 = vmatpush.bf16.msra.mxu0 0
        %456 = vmatpush.bf16.msra.mxu0 0
        %457 = vmatpush.bf16.msra.mxu0 0
        %458 = vmatpush.bf16.msra.mxu0 0
        %459 = vmatpush.bf16.msra.mxu0 0
        %460 = vmatpush.bf16.msra.mxu0 0
        %461 = vmatpush.bf16.msra.mxu0 %v452
        %462 = vmatmul.bf16.gmra.mxu0 %v448
        %v463 = vpop.f32.mrf.mxu0
        %v464 = vadd.f32 %v444, %v463
        %v465 = vpop.f32.mrf.mxu0
        %466 = vdwg.mxu0
        %v467 = vmax.f32 %v464, 0.0
        %v468 = vpack.c.bf16 %v467, %v467
        %v470 = vperm.slane %v424, 0
        %v476 = vunpack.c.l.b16 %v420
        %v477 = vunpack.c.l.b16 %v421
        %v478 = vunpack.c.l.b16 %v422
        %v479 = vunpack.c.l.b16 %v423
        %v480 = vpack.c.b16 %v477, %v476
        %v481 = vpack.c.b16 %v479, %v478
        %vm484 = vcmask 261120
        %v486 = vsel %vm484, %v468, 0
        %488 = vmatpush.bf16.msra.mxu0 0
        %489 = vmatpush.bf16.msra.mxu0 0
        %490 = vmatpush.bf16.msra.mxu0 0
        %491 = vmatpush.bf16.msra.mxu0 0
        %492 = vmatpush.bf16.msra.mxu0 0
        %493 = vmatpush.bf16.msra.mxu0 0
        %494 = vmatpush.bf16.msra.mxu0 %v481
        %495 = vmatpush.bf16.msra.mxu0 %v480
        %496 = vmatmul.bf16.gmra.mxu0 %v486
        %v497 = vpop.f32.mrf.mxu0
        %v498 = vadd.f32 %v470, %v497
        %v499 = vpop.f32.mrf.mxu0
        %500 = vdwg.mxu0
        %v505 = vunpack.c.l.b16 %v425
        %v506 = vunpack.c.l.b16 %v426
        %v507 = vunpack.c.l.b16 %v427
        %v508 = vunpack.c.l.b16 %v428
        %v509 = vpack.c.b16 %v506, %v505
        %v510 = vpack.c.b16 %v508, %v507
        %v514 = vsel %vm484, 0, 0
        %516 = vmatpush.bf16.msra.mxu0 0
        %517 = vmatpush.bf16.msra.mxu0 0
        %518 = vmatpush.bf16.msra.mxu0 0
        %519 = vmatpush.bf16.msra.mxu0 0
        %520 = vmatpush.bf16.msra.mxu0 0
        %521 = vmatpush.bf16.msra.mxu0 0
        %522 = vmatpush.bf16.msra.mxu0 %v510
        %523 = vmatpush.bf16.msra.mxu0 %v509
        %524 = vmatmul.bf16.gmra.mxu0 %v514
        %v525 = vpop.f32.mrf.mxu0
        %v526 = vadd.f32 0.0, %v525
        %v527 = vpop.f32.mrf.mxu0
        %528 = vdwg.mxu0
        %v529 = vadd.f32 %v498, %v526
        %v530 = vxor.u32 %v529, 2147483648
        %v531 = vmul.f32 %v530, 1.442695
        %v532 = vpow.pop %v531
        %v533 = vadd.f32 %v532, 1.0
        %v534 = vrcp.pop %v533
        %v535 = vmul.f32 %v533, %v534
        %v536 = vsub.f32 1.0, %v535
        %v537 = vmul.f32 %v534, %v536
        %v538 = vadd.f32 %v534, %v537
        %vm539 = vweird.f32 %v533
        %vm540 = vweird.f32 %v534
        %vm541 = vmor %vm539, %vm540
        %v542 = vsel %vm541, %v534, %v538
        %v543 = vand.u32 2147483647, %v533
        %vm544 = vcmp.eq.f32.partialorder %v543, 8.507059e+37
        %v545 = vand.u32 %v533, 2147483648
        %v546 = vor.u32 1.1754944e-38, %v545
        %v547 = vsel %vm544, %v546, %v542
        %v548 = vmul.f32 1.0, %v547
        %v550 = vperm.slane %v429, 0
        %551 = vrot.lane.b32.xlu0 %v550, 64
        %v552 = vpop.permute.xlu0 %551
        %v554 = vadd.f32 %v526, %v552
        %556 = vrot.lane.b32.xlu0 %v554, 64
        %v557 = vpop.permute.xlu0 %556
        %v559 = vmul.f32 %v548, %v557
        %561 = vrot.lane.b32.xlu0 %v559, 64
        %v562 = vpop.permute.xlu0 %561
        %v564 = vadd.f32 %v498, %v562
        %v565 = vtanh.pop %v564
        %v566 = vsub.f32 1.0, %v548
        %568 = vrot.lane.b32.xlu0 %v565, 96
        %v569 = vpop.permute.xlu0 %568
        %v571 = vmul.f32 %v566, %v569
        %v572 = vmul.f32 %v548, 0.0
        %v573 = vadd.f32 %v571, %v572
        %575 = vrot.lane.b32.xlu0 %v442, 124
        %v576 = vpop.permute.xlu0 %575
        %v578 = vsel %vm446, %v576, 0
        %580 = vmatpush.bf16.msra.mxu0 0
        %581 = vmatpush.bf16.msra.mxu0 0
        %582 = vmatpush.bf16.msra.mxu0 0
        %583 = vmatpush.bf16.msra.mxu0 0
        %584 = vmatpush.bf16.msra.mxu0 0
        %585 = vmatpush.bf16.msra.mxu0 0
        %586 = vmatpush.bf16.msra.mxu0 0
        %587 = vmatpush.bf16.msra.mxu0 %v452
        %588 = vmatmul.bf16.gmra.mxu0 %v578
        %v589 = vpop.f32.mrf.mxu0
        %v590 = vadd.f32 %v444, %v589
        %v591 = vpop.f32.mrf.mxu0
        %592 = vdwg.mxu0
        %v593 = vmax.f32 %v590, 0.0
        %v594 = vpack.c.bf16 %v593, %v593
        %v596 = vsel %vm484, %v594, 0
        %598 = vmatpush.bf16.msra.mxu0 0
        %599 = vmatpush.bf16.msra.mxu0 0
        %600 = vmatpush.bf16.msra.mxu0 0
        %601 = vmatpush.bf16.msra.mxu0 0
        %602 = vmatpush.bf16.msra.mxu0 0
        %603 = vmatpush.bf16.msra.mxu0 0
        %604 = vmatpush.bf16.msra.mxu0 %v481
        %605 = vmatpush.bf16.msra.mxu0 %v480
        %606 = vmatmul.bf16.gmra.mxu0 %v596
        %v607 = vpop.f32.mrf.mxu0
        %v608 = vadd.f32 %v470, %v607
        %v609 = vpop.f32.mrf.mxu0
        %610 = vdwg.mxu0
        %v611 = vpack.c.bf16 %v573, %v573
        %613 = vrot.lane.b32.xlu0 %v611, 96
        %v614 = vpop.permute.xlu0 %613
        %v616 = vsel %vm484, %v614, 0
        %618 = vmatpush.bf16.msra.mxu0 0
        %619 = vmatpush.bf16.msra.mxu0 0
        %620 = vmatpush.bf16.msra.mxu0 0
        %621 = vmatpush.bf16.msra.mxu0 0
        %622 = vmatpush.bf16.msra.mxu0 0
        %623 = vmatpush.bf16.msra.mxu0 0
        %624 = vmatpush.bf16.msra.mxu0 %v510
        %625 = vmatpush.bf16.msra.mxu0 %v509
        %626 = vmatmul.bf16.gmra.mxu0 %v616
        %v627 = vpop.f32.mrf.mxu0
        %v628 = vadd.f32 0.0, %v627
        %v629 = vpop.f32.mrf.mxu0
        %630 = vdwg.mxu0
        %v631 = vadd.f32 %v608, %v628
        %v632 = vxor.u32 %v631, 2147483648
        %v633 = vmul.f32 %v632, 1.442695
        %v634 = vpow.pop %v633
        %v635 = vadd.f32 %v634, 1.0
        %v636 = vrcp.pop %v635
        %v637 = vmul.f32 %v635, %v636
        %v638 = vsub.f32 1.0, %v637
        %v639 = vmul.f32 %v636, %v638
        %v640 = vadd.f32 %v636, %v639
        %vm641 = vweird.f32 %v635
        %vm642 = vweird.f32 %v636
        %vm643 = vmor %vm641, %vm642
        %v644 = vsel %vm643, %v636, %v640
        %v645 = vand.u32 2147483647, %v635
        %vm646 = vcmp.eq.f32.partialorder %v645, 8.507059e+37
        %v647 = vand.u32 %v635, 2147483648
        %v648 = vor.u32 1.1754944e-38, %v647
        %v649 = vsel %vm646, %v648, %v644
        %v650 = vmul.f32 1.0, %v649
        %v651 = vadd.f32 %v628, %v552
        %653 = vrot.lane.b32.xlu0 %v651, 64
        %v654 = vpop.permute.xlu0 %653
        %v656 = vmul.f32 %v650, %v654
        %658 = vrot.lane.b32.xlu0 %v656, 64
        %v659 = vpop.permute.xlu0 %658
        %v661 = vadd.f32 %v608, %v659
        %v662 = vtanh.pop %v661
        %v663 = vsub.f32 1.0, %v650
        %665 = vrot.lane.b32.xlu0 %v662, 96
        %v666 = vpop.permute.xlu0 %665
        %v668 = vmul.f32 %v663, %v666
        %v669 = vmul.f32 %v650, %v573
        %v670 = vadd.f32 %v668, %v669
        %671 = vrot.lane.b32.xlu0 %v442, 120
        %v672 = vpop.permute.xlu0 %671
        %v674 = vsel %vm446, %v672, 0
        %676 = vmatpush.bf16.msra.mxu0 0
        %677 = vmatpush.bf16.msra.mxu0 0
        %678 = vmatpush.bf16.msra.mxu0 0
        %679 = vmatpush.bf16.msra.mxu0 0
        %680 = vmatpush.bf16.msra.mxu0 0
        %681 = vmatpush.bf16.msra.mxu0 0
        %682 = vmatpush.bf16.msra.mxu0 0
        %683 = vmatpush.bf16.msra.mxu0 %v452
        %684 = vmatmul.bf16.gmra.mxu0 %v674
        %v685 = vpop.f32.mrf.mxu0
        %v686 = vadd.f32 %v444, %v685
        %v687 = vpop.f32.mrf.mxu0
        %688 = vdwg.mxu0
        %v689 = vmax.f32 %v686, 0.0
        %v690 = vpack.c.bf16 %v689, %v689
        %v692 = vsel %vm484, %v690, 0
        %694 = vmatpush.bf16.msra.mxu0 0
        %695 = vmatpush.bf16.msra.mxu0 0
        %696 = vmatpush.bf16.msra.mxu0 0
        %697 = vmatpush.bf16.msra.mxu0 0
        %698 = vmatpush.bf16.msra.mxu0 0
        %699 = vmatpush.bf16.msra.mxu0 0
        %700 = vmatpush.bf16.msra.mxu0 %v481
        %701 = vmatpush.bf16.msra.mxu0 %v480
        %702 = vmatmul.bf16.gmra.mxu0 %v692
        %v703 = vpop.f32.mrf.mxu0
        %v704 = vadd.f32 %v470, %v703
        %v705 = vpop.f32.mrf.mxu0
        %706 = vdwg.mxu0
        %v707 = vpack.c.bf16 %v670, %v670
        %709 = vrot.lane.b32.xlu0 %v707, 96
        %v710 = vpop.permute.xlu0 %709
        %v712 = vsel %vm484, %v710, 0
        %714 = vmatpush.bf16.msra.mxu0 0
        %715 = vmatpush.bf16.msra.mxu0 0
        %716 = vmatpush.bf16.msra.mxu0 0
        %717 = vmatpush.bf16.msra.mxu0 0
        %718 = vmatpush.bf16.msra.mxu0 0
        %719 = vmatpush.bf16.msra.mxu0 0
        %720 = vmatpush.bf16.msra.mxu0 %v510
        %721 = vmatpush.bf16.msra.mxu0 %v509
        %722 = vmatmul.bf16.gmra.mxu0 %v712
        %v723 = vpop.f32.mrf.mxu0
        %v724 = vadd.f32 0.0, %v723
        %v725 = vpop.f32.mrf.mxu0
        %726 = vdwg.mxu0
        %v727 = vadd.f32 %v704, %v724
        %v728 = vxor.u32 %v727, 2147483648
        %v729 = vmul.f32 %v728, 1.442695
        %v730 = vpow.pop %v729
        %v731 = vadd.f32 %v730, 1.0
        %v732 = vrcp.pop %v731
        %v733 = vmul.f32 %v731, %v732
        %v734 = vsub.f32 1.0, %v733
        %v735 = vmul.f32 %v732, %v734
        %v736 = vadd.f32 %v732, %v735
        %vm737 = vweird.f32 %v731
        %vm738 = vweird.f32 %v732
        %vm739 = vmor %vm737, %vm738
        %v740 = vsel %vm739, %v732, %v736
        %v741 = vand.u32 2147483647, %v731
        %vm742 = vcmp.eq.f32.partialorder %v741, 8.507059e+37
        %v743 = vand.u32 %v731, 2147483648
        %v744 = vor.u32 1.1754944e-38, %v743
        %v745 = vsel %vm742, %v744, %v740
        %v746 = vmul.f32 1.0, %v745
        %v747 = vadd.f32 %v724, %v552
        %749 = vrot.lane.b32.xlu0 %v747, 64
        %v750 = vpop.permute.xlu0 %749
        %v752 = vmul.f32 %v746, %v750
        %754 = vrot.lane.b32.xlu0 %v752, 64
        %v755 = vpop.permute.xlu0 %754
        %v757 = vadd.f32 %v704, %v755
        %v758 = vtanh.pop %v757
        %v759 = vsub.f32 1.0, %v746
        %761 = vrot.lane.b32.xlu0 %v758, 96
        %v762 = vpop.permute.xlu0 %761
        %v764 = vmul.f32 %v759, %v762
        %v765 = vmul.f32 %v746, %v670
        %v766 = vadd.f32 %v764, %v765
        %767 = vrot.lane.b32.xlu0 %v442, 116
        %v768 = vpop.permute.xlu0 %767
        %v770 = vsel %vm446, %v768, 0
        %772 = vmatpush.bf16.msra.mxu0 0
        %773 = vmatpush.bf16.msra.mxu0 0
        %774 = vmatpush.bf16.msra.mxu0 0
        %775 = vmatpush.bf16.msra.mxu0 0
        %776 = vmatpush.bf16.msra.mxu0 0
        %777 = vmatpush.bf16.msra.mxu0 0
        %778 = vmatpush.bf16.msra.mxu0 0
        %779 = vmatpush.bf16.msra.mxu0 %v452
        %780 = vmatmul.bf16.gmra.mxu0 %v770
        %v781 = vpop.f32.mrf.mxu0
        %v782 = vadd.f32 %v444, %v781
        %v783 = vpop.f32.mrf.mxu0
        %784 = vdwg.mxu0
        %v785 = vmax.f32 %v782, 0.0
        %v786 = vpack.c.bf16 %v785, %v785
        %v788 = vsel %vm484, %v786, 0
        %790 = vmatpush.bf16.msra.mxu0 0
        %791 = vmatpush.bf16.msra.mxu0 0
        %792 = vmatpush.bf16.msra.mxu0 0
        %793 = vmatpush.bf16.msra.mxu0 0
        %794 = vmatpush.bf16.msra.mxu0 0
        %795 = vmatpush.bf16.msra.mxu0 0
        %796 = vmatpush.bf16.msra.mxu0 %v481
        %797 = vmatpush.bf16.msra.mxu0 %v480
        %798 = vmatmul.bf16.gmra.mxu0 %v788
        %v799 = vpop.f32.mrf.mxu0
        %v800 = vadd.f32 %v470, %v799
        %v801 = vpop.f32.mrf.mxu0
        %802 = vdwg.mxu0
        %v803 = vpack.c.bf16 %v766, %v766
        %805 = vrot.lane.b32.xlu0 %v803, 96
        %v806 = vpop.permute.xlu0 %805
        %v808 = vsel %vm484, %v806, 0
        %810 = vmatpush.bf16.msra.mxu0 0
        %811 = vmatpush.bf16.msra.mxu0 0
        %812 = vmatpush.bf16.msra.mxu0 0
        %813 = vmatpush.bf16.msra.mxu0 0
        %814 = vmatpush.bf16.msra.mxu0 0
        %815 = vmatpush.bf16.msra.mxu0 0
        %816 = vmatpush.bf16.msra.mxu0 %v510
        %817 = vmatpush.bf16.msra.mxu0 %v509
        %818 = vmatmul.bf16.gmra.mxu0 %v808
        %v819 = vpop.f32.mrf.mxu0
        %v820 = vadd.f32 0.0, %v819
        %v821 = vpop.f32.mrf.mxu0
        %822 = vdwg.mxu0
        %v823 = vadd.f32 %v800, %v820
        %v824 = vxor.u32 %v823, 2147483648
        %v825 = vmul.f32 %v824, 1.442695
        %v826 = vpow.pop %v825
        %v827 = vadd.f32 %v826, 1.0
        %v828 = vrcp.pop %v827
        %v829 = vmul.f32 %v827, %v828
        %v830 = vsub.f32 1.0, %v829
        %v831 = vmul.f32 %v828, %v830
        %v832 = vadd.f32 %v828, %v831
        %vm833 = vweird.f32 %v827
        %vm834 = vweird.f32 %v828
        %vm835 = vmor %vm833, %vm834
        %v836 = vsel %vm835, %v828, %v832
        %v837 = vand.u32 2147483647, %v827
        %vm838 = vcmp.eq.f32.partialorder %v837, 8.507059e+37
        %v839 = vand.u32 %v827, 2147483648
        %v840 = vor.u32 1.1754944e-38, %v839
        %v841 = vsel %vm838, %v840, %v836
        %v842 = vmul.f32 1.0, %v841
        %v843 = vadd.f32 %v820, %v552
        %845 = vrot.lane.b32.xlu0 %v843, 64
        %v846 = vpop.permute.xlu0 %845
        %v848 = vmul.f32 %v842, %v846
        %850 = vrot.lane.b32.xlu0 %v848, 64
        %v851 = vpop.permute.xlu0 %850
        %v853 = vadd.f32 %v800, %v851
        %v854 = vtanh.pop %v853
        %v855 = vsub.f32 1.0, %v842
        %857 = vrot.lane.b32.xlu0 %v854, 96
        %v858 = vpop.permute.xlu0 %857
        %v860 = vmul.f32 %v855, %v858
        %v861 = vmul.f32 %v842, %v766
        %v862 = vadd.f32 %v860, %v861
        %v863 = vpack.c.bf16 %v862, %v862
        %865 = vrot.lane.b32.xlu0 %v863, 96
        %v866 = vpop.permute.xlu0 %865
        %v868 = vsel %vm484, %v866, 0
        %870 = vmatpush.bf16.msra.mxu0 0
        %871 = vmatpush.bf16.msra.mxu0 0
        %872 = vmatpush.bf16.msra.mxu0 0
        %873 = vmatpush.bf16.msra.mxu0 0
        %874 = vmatpush.bf16.msra.mxu0 0
        %875 = vmatpush.bf16.msra.mxu0 0
        %876 = vmatpush.bf16.msra.mxu0 %v510
        %877 = vmatpush.bf16.msra.mxu0 %v509
        %878 = vmatmul.bf16.gmra.mxu0 %v868
        %v879 = vpop.f32.mrf.mxu0
        %v880 = vadd.f32 0.0, %v879
        %v881 = vpop.f32.mrf.mxu0
        %882 = vdwg.mxu0
        %v883 = vadd.f32 %v880, %v552
        %v884 = vld [vmem:[%s8] sm:$0xff]
        %v885 = vadd.f32 %v884, %v880
        %v886 = vxor.u32 %v885, 2147483648
        %v887 = vmul.f32 %v886, 1.442695
        %v888 = vpow.pop %v887
        %v889 = vadd.f32 %v888, 1.0
        %v890 = vrcp.pop %v889
        %v891 = vmul.f32 %v889, %v890
        %v892 = vsub.f32 1.0, %v891
        %v893 = vmul.f32 %v890, %v892
        %v894 = vadd.f32 %v890, %v893
        %vm895 = vweird.f32 %v889
        %vm896 = vweird.f32 %v890
        %vm897 = vmor %vm895, %vm896
        %v898 = vsel %vm897, %v890, %v894
        %v899 = vand.u32 2147483647, %v889
        %vm900 = vcmp.eq.f32.partialorder %v899, 8.507059e+37
        %v901 = vand.u32 %v889, 2147483648
        %v902 = vor.u32 1.1754944e-38, %v901
        %v903 = vsel %vm900, %v902, %v898
        %v904 = vmul.f32 1.0, %v903
        %906 = vrot.lane.b32.xlu0 %v883, 64
        %v907 = vpop.permute.xlu0 %906
        %v909 = vmul.f32 %v904, %v907
        %911 = vrot.lane.b32.xlu0 %v909, 64
        %v912 = vpop.permute.xlu0 %911
        %v914 = vadd.f32 %v884, %v912
        %v915 = vtanh.pop %v914
        %v916 = vsub.f32 1.0, %v904
        %918 = vrot.lane.b32.xlu0 %v915, 96
        %v919 = vpop.permute.xlu0 %918
        %v921 = vmul.f32 %v916, %v919
        %v922 = vmul.f32 %v904, %v862
        %v923 = vadd.f32 %v921, %v922
        %s924 = scalar_lea.vmem %s8, 8
        %v925 = vld [vmem:[%s924] sm:$0xff]
        %v926 = vadd.f32 %v925, %v880
        %v927 = vxor.u32 %v926, 2147483648
        %v928 = vmul.f32 %v927, 1.442695
        %v929 = vpow.pop %v928
        %v930 = vadd.f32 %v929, 1.0
        %v931 = vrcp.pop %v930
        %v932 = vmul.f32 %v930, %v931
        %v933 = vsub.f32 1.0, %v932
        %v934 = vmul.f32 %v931, %v933
        %v935 = vadd.f32 %v931, %v934
        %vm936 = vweird.f32 %v930
        %vm937 = vweird.f32 %v931
        %vm938 = vmor %vm936, %vm937
        %v939 = vsel %vm938, %v931, %v935
        %v940 = vand.u32 2147483647, %v930
        %vm941 = vcmp.eq.f32.partialorder %v940, 8.507059e+37
        %v942 = vand.u32 %v930, 2147483648
        %v943 = vor.u32 1.1754944e-38, %v942
        %v944 = vsel %vm941, %v943, %v939
        %v945 = vmul.f32 1.0, %v944
        %v946 = vmul.f32 %v945, %v907
        %948 = vrot.lane.b32.xlu0 %v946, 64
        %v949 = vpop.permute.xlu0 %948
        %v951 = vadd.f32 %v925, %v949
        %v952 = vtanh.pop %v951
        %v953 = vsub.f32 1.0, %v945
        %955 = vrot.lane.b32.xlu0 %v952, 96
        %v956 = vpop.permute.xlu0 %955
        %v958 = vmul.f32 %v953, %v956
        %v959 = vmul.f32 %v945, %v862
        %v960 = vadd.f32 %v958, %v959
        %v961 = vpack.c.bf16 %v960, %v923
        %v963 = vperm.slane %v434, 0
        %966 = vrot.lane.b32.xlu0 %v961, 96
        %v967 = vpop.permute.xlu0 %966
        %v972 = vunpack.c.l.b16 %v430
        %v973 = vunpack.c.l.b16 %v431
        %v974 = vunpack.c.l.b16 %v432
        %v975 = vunpack.c.l.b16 %v433
        %v976 = vpack.c.b16 %v973, %v972
        %v977 = vpack.c.b16 %v975, %v974
        %v981 = vsel %vm484, %v967, 0
        %983 = vmatpush.bf16.msra.mxu0 0
        %984 = vmatpush.bf16.msra.mxu0 0
        %985 = vmatpush.bf16.msra.mxu0 0
        %986 = vmatpush.bf16.msra.mxu0 0
        %987 = vmatpush.bf16.msra.mxu0 0
        %988 = vmatpush.bf16.msra.mxu0 0
        %989 = vmatpush.bf16.msra.mxu0 %v977
        %990 = vmatpush.bf16.msra.mxu0 %v976
        %991 = vmatmul.bf16.gmra.mxu0 %v981
        %v992 = vpop.f32.mrf.mxu0
        %v993 = vadd.f32 %v963, %v992
        %v994 = vpop.f32.mrf.mxu0
        %v995 = vadd.f32 %v963, %v994
        %996 = vdwg.mxu0
        %vm997 = vcmask 1047616
        %998 = vst.msk [vmem:[%s415] sm:$0xff] %vm997, 0.0
        %v999 = vadd.f32 %v993, %v439
        %1000 = vst.msk [vmem:[%s415] sm:$0xff] %vm446, %v999
        %v1001 = vadd.f32 %v995, %v439
        %1003 = vrot.lane.b32.xlu0 %v1001, 4
        %v1004 = vpop.permute.xlu0 %1003
        %vm1006 = vcmask 64544
        %1007 = vst.msk [vmem:[%s415] sm:$0xff] %vm1006, %v1004
        %p1008 = scmp.lt.s32.totalorder %s23, 1
        %s1009 = scalar_select %p1008, %s23, 1
        %s1010 = smul.addr %s1009, 8
        %s1011 = scalar_lea.vmem %s11, %s1010
        // Predicated region
        $region69: #{_lambda_.1} parent=63 // pred_check
          %p1012 = pneg %p282
        $region70: #{_lambda_.1} parent=63 // pred_check_branch
          %1014 = sbr.rel (%p1012) target = $region72
        $region71: #{_lambda_.1} parent=63 // pred_region
          _
        $region72: #{_lambda_.1} parent=63 // pred_fallthru
          _
      $region64: #{_lambda_.1} parent=5 // pred_fallthru
        _
      %p1015 = scmp.le.s32.totalorder 2, %s18
      // Predicated region
      $region73: #{_lambda_.1} parent=5 // pred_check
        %p1016 = pneg %p1015
      $region74: #{_lambda_.1} parent=5 // pred_check_branch
        %1018 = sbr.rel (%p1016) target = $region76
      $region75: #{_lambda_.1} parent=5 // pred_region
        %s1019 = ssub.s32 %s18, 2
        // Predicated region
        $region77: #{_lambda_.1} parent=75 // pred_check
          %p1020 = pneg %p288
        $region78: #{_lambda_.1} parent=75 // pred_check_branch
          %1022 = sbr.rel (%p1020) target = $region80
        $region79: #{_lambda_.1} parent=75 // pred_region
          %p1023 = scmp.lt.s32.totalorder %s24, 1
          %s1024 = scalar_select %p1023, %s24, 1
          %s1025 = smul.addr %s1024, 8
          %s1026 = scalar_lea.vmem %s11, %s1025
        $region80: #{_lambda_.1} parent=75 // pred_fallthru
          _
      $region76: #{_lambda_.1} parent=5 // pred_fallthru
        _
    $region6: #{_lambda_.1} parent=1 // loop_footer
      %s22 = sadd.s32 1, %s18
    $region7: #{_lambda_.1} parent=1 // loop_footer_branch
      %17 = sbr.rel target = $region3
    $region8: #{_lambda_.1} parent=1 // loop_exit
      _
    %1027 = vsyncpa [#allocation3], 1
    %s1028 = scalar_lea.sflag [#allocation3], 1
    %1029 = vsyncpa %s1028, 1

// kernel: _lambda_.1
$region0: #{_lambda_.1}
  #allocation0 [shape = 'u32[]', space=smem, size = 0x4, offset = 0x4, fixed_abs, tag = 'smem constant byte address 0x4 - core index']
  #allocation1 [shape = 'u32[72,128]{1,0:T(1,128)}', space=vmem, size = 0x9000, scoped, tag = 'internal scratch']
  %s0 = inlined_call_operand.vmem [shape: f32[16,16], index: 0, kind: input, shape index: {}]
  %s1 = inlined_call_operand.vmem [shape: f32[16,1], index: 1, kind: input, shape index: {}]
  %s2 = inlined_call_operand.vmem [shape: bf16[4,32], index: 2, kind: input, shape index: {}]
  %s3 = inlined_call_operand.vmem [shape: f32[1,32], index: 3, kind: input, shape index: {}]
  %s4 = inlined_call_operand.hbm [shape: bf16[32,96], index: 4, kind: input, shape index: {}]
  %s5 = inlined_call_operand.vmem [shape: f32[1,96], index: 5, kind: input, shape index: {}]
  %s6 = inlined_call_operand.vmem [shape: bf16[32,96], index: 6, kind: input, shape index: {}]
  %s7 = inlined_call_operand.vmem [shape: f32[1,32], index: 7, kind: input, shape index: {}]
  %s8 = inlined_call_operand.vmem [shape: f32[2,8,96], index: 8, kind: input, shape index: {}]
  %s9 = inlined_call_operand.vmem [shape: bf16[32,4], index: 9, kind: input, shape index: {}]
  %s10 = inlined_call_operand.vmem [shape: f32[1,4], index: 10, kind: input, shape index: {}]
  %s11 = inlined_call_operand.vmem [shape: f32[16,128], index: 11, kind: output, shape index: {}]
  %s12 = sld [smem:[#allocation0]]
  $region81: #{_lambda_.1} parent=0
    _
  %s14 = ssub.s32 1, %s12
  %s15 = scalar_select 0, %s14, %s12
  $region1: #{_lambda_.1} parent=0
    #allocation2 [shape = 'u8[8192]{0}', space=vmem, size = 0x2000, scoped, tag = 'input window, operand 4, single buffered']
    #allocation3 [shape = 's32[2]{0}', space=sflag, size = 0x8, scoped, tag = 'scoped memory for _lambda_.1']
    %16 = vsyncpa [#allocation3], 0
    loop: start=0, step=1, limit=4
    $region2: #{_lambda_.1} parent=1 // loop_pre_header
      _
    $region3: #{_lambda_.1} parent=1 // loop_header
      %s18 = sphi 0, %s22
      %p19 = scmp.ge.s32.totalorder %s18, 4
      %s28 = sphi 0, %s30
      %s31 = sphi 0, %s28
      %s32 = sphi 0, %s31
      %s48 = sphi 0, %s32
      %s54 = sphi 0, %s56
      %s57 = sphi 0, %s54
      %s58 = sphi 0, %s57
      %s74 = sphi 0, %s58
      %s78 = sphi 0, %s78
      %s80 = sphi 0, %s78
      %s81 = sphi 0, %s80
      %s95 = sphi 0, %s81
      %s99 = sphi 0, %s99
      %s101 = sphi 0, %s99
      %s102 = sphi 0, %s101
      %s116 = sphi 0, %s102
      %s120 = sphi 0, %s120
      %s122 = sphi 0, %s120
      %s123 = sphi 0, %s122
      %s137 = sphi 0, %s123
      %s141 = sphi 0, %s141
      %s143 = sphi 0, %s141
      %s144 = sphi 0, %s143
      %s158 = sphi 0, %s144
      %s162 = sphi 0, %s162
      %s164 = sphi 0, %s162
      %s165 = sphi 0, %s164
      %s179 = sphi 0, %s165
      %s183 = sphi 0, %s183
      %s185 = sphi 0, %s183
      %s186 = sphi 0, %s185
      %s200 = sphi 0, %s186
      %s204 = sphi 0, %s204
      %s206 = sphi 0, %s204
      %s207 = sphi 0, %s206
      %s221 = sphi 0, %s207
      %s225 = sphi 0, %s225
      %s227 = sphi 0, %s225
      %s228 = sphi 0, %s227
      %s242 = sphi 0, %s228
      %s246 = sphi 0, %s246
      %s248 = sphi 0, %s246
      %s249 = sphi 0, %s248
      %s263 = sphi 0, %s249
      %s269 = sphi 0, %s271
      %s272 = sphi 0, %s269
      %s273 = sphi 0, %s272
      %s289 = sphi 0, %s273
    $region4: #{_lambda_.1} parent=1 // loop_header_branch
      %21 = sbr.rel (%p19) target = $region8
    $region5: #{_lambda_.1} parent=1 // loop_body
      %s23 = ssub.s32 %s18, 1
      %s24 = ssub.s32 %s18, 2
      %s25 = sadd.s32 %s18, 1
      %s26 = ssub.s32 %s18, %s25
      %p27 = scmp.eq.s32.totalorder %s26, 0
      %s29 = sadd.s32 %s28, 1
      %s30 = scalar_select %p27, %s28, %s29
      %p33 = pneg %p27
      %p34 = scmp.eq.s32.totalorder %s18, 1
      %p35 = por %p33, %p34
      %p36 = scmp.ne.s32.totalorder %s28, %s31
      %p37 = scmp.eq.s32.totalorder %s18, 0
      %p38 = por %p36, %p37
      %p39 = scmp.ne.s32.totalorder %s28, %s31
      %p40 = scmp.eq.s32.totalorder %s23, 1
      %p41 = por %p39, %p40
      %p42 = scmp.ne.s32.totalorder %s31, %s32
      %p43 = scmp.eq.s32.totalorder %s23, 0
      %p44 = por %p42, %p43
      %p45 = scmp.ne.s32.totalorder %s31, %s32
      %p46 = scmp.eq.s32.totalorder %s24, 1
      %p47 = por %p45, %p46
      %p49 = scmp.ne.s32.totalorder %s32, %s48
      %p50 = scmp.eq.s32.totalorder %s24, 0
      %p51 = por %p49, %p50
      %s52 = ssub.s32 %s18, %s25
      %p53 = scmp.eq.s32.totalorder %s52, 0
      %s55 = sadd.s32 %s54, 1
      %s56 = scalar_select %p53, %s54, %s55
      %p59 = pneg %p53
      %p60 = scmp.eq.s32.totalorder %s18, 1
      %p61 = por %p59, %p60
      %p62 = scmp.ne.s32.totalorder %s54, %s57
      %p63 = scmp.eq.s32.totalorder %s18, 0
      %p64 = por %p62, %p63
      %p65 = scmp.ne.s32.totalorder %s54, %s57
      %p66 = scmp.eq.s32.totalorder %s23, 1
      %p67 = por %p65, %p66
      %p68 = scmp.ne.s32.totalorder %s57, %s58
      %p69 = scmp.eq.s32.totalorder %s23, 0
      %p70 = por %p68, %p69
      %p71 = scmp.ne.s32.totalorder %s57, %s58
      %p72 = scmp.eq.s32.totalorder %s24, 1
      %p73 = por %p71, %p72
      %p75 = scmp.ne.s32.totalorder %s58, %s74
      %p76 = scmp.eq.s32.totalorder %s24, 0
      %p77 = por %p75, %p76
      %s79 = sadd.s32 %s78, 1
      %p82 = scmp.eq.s32.totalorder %s18, 1
      %p83 = scmp.ne.s32.totalorder %s78, %s80
      %p84 = scmp.eq.s32.totalorder %s18, 0
      %p85 = por %p83, %p84
      %p86 = scmp.ne.s32.totalorder %s78, %s80
      %p87 = scmp.eq.s32.totalorder %s23, 1
      %p88 = por %p86, %p87
      %p89 = scmp.ne.s32.totalorder %s80, %s81
      %p90 = scmp.eq.s32.totalorder %s23, 0
      %p91 = por %p89, %p90
      %p92 = scmp.ne.s32.totalorder %s80, %s81
      %p93 = scmp.eq.s32.totalorder %s24, 1
      %p94 = por %p92, %p93
      %p96 = scmp.ne.s32.totalorder %s81, %s95
      %p97 = scmp.eq.s32.totalorder %s24, 0
      %p98 = por %p96, %p97
      %s100 = sadd.s32 %s99, 1
      %p103 = scmp.eq.s32.totalorder %s18, 1
      %p104 = scmp.ne.s32.totalorder %s99, %s101
      %p105 = scmp.eq.s32.totalorder %s18, 0
      %p106 = por %p104, %p105
      %p107 = scmp.ne.s32.totalorder %s99, %s101
      %p108 = scmp.eq.s32.totalorder %s23, 1
      %p109 = por %p107, %p108
      %p110 = scmp.ne.s32.totalorder %s101, %s102
      %p111 = scmp.eq.s32.totalorder %s23, 0
      %p112 = por %p110, %p111
      %p113 = scmp.ne.s32.totalorder %s101, %s102
      %p114 = scmp.eq.s32.totalorder %s24, 1
      %p115 = por %p113, %p114
      %p117 = scmp.ne.s32.totalorder %s102, %s116
      %p118 = scmp.eq.s32.totalorder %s24, 0
      %p119 = por %p117, %p118
      %s121 = sadd.s32 %s120, 1
      %p124 = scmp.eq.s32.totalorder %s18, 1
      %p125 = scmp.ne.s32.totalorder %s120, %s122
      %p126 = scmp.eq.s32.totalorder %s18, 0
      %p127 = por %p125, %p126
      %p128 = scmp.ne.s32.totalorder %s120, %s122
      %p129 = scmp.eq.s32.totalorder %s23, 1
      %p130 = por %p128, %p129
      %p131 = scmp.ne.s32.totalorder %s122, %s123
      %p132 = scmp.eq.s32.totalorder %s23, 0
      %p133 = por %p131, %p132
      %p134 = scmp.ne.s32.totalorder %s122, %s123
      %p135 = scmp.eq.s32.totalorder %s24, 1
      %p136 = por %p134, %p135
      %p138 = scmp.ne.s32.totalorder %s123, %s137
      %p139 = scmp.eq.s32.totalorder %s24, 0
      %p140 = por %p138, %p139
      %s142 = sadd.s32 %s141, 1
      %p145 = scmp.eq.s32.totalorder %s18, 1
      %p146 = scmp.ne.s32.totalorder %s141, %s143
      %p147 = scmp.eq.s32.totalorder %s18, 0
      %p148 = por %p146, %p147
      %p149 = scmp.ne.s32.totalorder %s141, %s143
      %p150 = scmp.eq.s32.totalorder %s23, 1
      %p151 = por %p149, %p150
      %p152 = scmp.ne.s32.totalorder %s143, %s144
      %p153 = scmp.eq.s32.totalorder %s23, 0
      %p154 = por %p152, %p153
      %p155 = scmp.ne.s32.totalorder %s143, %s144
      %p156 = scmp.eq.s32.totalorder %s24, 1
      %p157 = por %p155, %p156
      %p159 = scmp.ne.s32.totalorder %s144, %s158
      %p160 = scmp.eq.s32.totalorder %s24, 0
      %p161 = por %p159, %p160
      %s163 = sadd.s32 %s162, 1
      %p166 = scmp.eq.s32.totalorder %s18, 1
      %p167 = scmp.ne.s32.totalorder %s162, %s164
      %p168 = scmp.eq.s32.totalorder %s18, 0
      %p169 = por %p167, %p168
      %p170 = scmp.ne.s32.totalorder %s162, %s164
      %p171 = scmp.eq.s32.totalorder %s23, 1
      %p172 = por %p170, %p171
      %p173 = scmp.ne.s32.totalorder %s164, %s165
      %p174 = scmp.eq.s32.totalorder %s23, 0
      %p175 = por %p173, %p174
      %p176 = scmp.ne.s32.totalorder %s164, %s165
      %p177 = scmp.eq.s32.totalorder %s24, 1
      %p178 = por %p176, %p177
      %p180 = scmp.ne.s32.totalorder %s165, %s179
      %p181 = scmp.eq.s32.totalorder %s24, 0
      %p182 = por %p180, %p181
      %s184 = sadd.s32 %s183, 1
      %p187 = scmp.eq.s32.totalorder %s18, 1
      %p188 = scmp.ne.s32.totalorder %s183, %s185
      %p189 = scmp.eq.s32.totalorder %s18, 0
      %p190 = por %p188, %p189
      %p191 = scmp.ne.s32.totalorder %s183, %s185
      %p192 = scmp.eq.s32.totalorder %s23, 1
      %p193 = por %p191, %p192
      %p194 = scmp.ne.s32.totalorder %s185, %s186
      %p195 = scmp.eq.s32.totalorder %s23, 0
      %p196 = por %p194, %p195
      %p197 = scmp.ne.s32.totalorder %s185, %s186
      %p198 = scmp.eq.s32.totalorder %s24, 1
      %p199 = por %p197, %p198
      %p201 = scmp.ne.s32.totalorder %s186, %s200
      %p202 = scmp.eq.s32.totalorder %s24, 0
      %p203 = por %p201, %p202
      %s205 = sadd.s32 %s204, 1
      %p208 = scmp.eq.s32.totalorder %s18, 1
      %p209 = scmp.ne.s32.totalorder %s204, %s206
      %p210 = scmp.eq.s32.totalorder %s18, 0
      %p211 = por %p209, %p210
      %p212 = scmp.ne.s32.totalorder %s204, %s206
      %p213 = scmp.eq.s32.totalorder %s23, 1
      %p214 = por %p212, %p213
      %p215 = scmp.ne.s32.totalorder %s206, %s207
      %p216 = scmp.eq.s32.totalorder %s23, 0
      %p217 = por %p215, %p216
      %p218 = scmp.ne.s32.totalorder %s206, %s207
      %p219 = scmp.eq.s32.totalorder %s24, 1
      %p220 = por %p218, %p219
      %p222 = scmp.ne.s32.totalorder %s207, %s221
      %p223 = scmp.eq.s32.totalorder %s24, 0
      %p224 = por %p222, %p223
      %s226 = sadd.s32 %s225, 1
      %p229 = scmp.eq.s32.totalorder %s18, 1
      %p230 = scmp.ne.s32.totalorder %s225, %s227
      %p231 = scmp.eq.s32.totalorder %s18, 0
      %p232 = por %p230, %p231
      %p233 = scmp.ne.s32.totalorder %s225, %s227
      %p234 = scmp.eq.s32.totalorder %s23, 1
      %p235 = por %p233, %p234
      %p236 = scmp.ne.s32.totalorder %s227, %s228
      %p237 = scmp.eq.s32.totalorder %s23, 0
      %p238 = por %p236, %p237
      %p239 = scmp.ne.s32.totalorder %s227, %s228
      %p240 = scmp.eq.s32.totalorder %s24, 1
      %p241 = por %p239, %p240
      %p243 = scmp.ne.s32.totalorder %s228, %s242
      %p244 = scmp.eq.s32.totalorder %s24, 0
      %p245 = por %p243, %p244
      %s247 = sadd.s32 %s246, 1
      %p250 = scmp.eq.s32.totalorder %s18, 1
      %p251 = scmp.ne.s32.totalorder %s246, %s248
      %p252 = scmp.eq.s32.totalorder %s18, 0
      %p253 = por %p251, %p252
      %p254 = scmp.ne.s32.totalorder %s246, %s248
      %p255 = scmp.eq.s32.totalorder %s23, 1
      %p256 = por %p254, %p255
      %p257 = scmp.ne.s32.totalorder %s248, %s249
      %p258 = scmp.eq.s32.totalorder %s23, 0
      %p259 = por %p257, %p258
      %p260 = scmp.ne.s32.totalorder %s248, %s249
      %p261 = scmp.eq.s32.totalorder %s24, 1
      %p262 = por %p260, %p261
      %p264 = scmp.ne.s32.totalorder %s249, %s263
      %p265 = scmp.eq.s32.totalorder %s24, 0
      %p266 = por %p264, %p265
      %s267 = ssub.s32 %s18, %s25
      %p268 = scmp.eq.s32.totalorder %s267, 0
      %s270 = sadd.s32 %s269, 1
      %s271 = scalar_select %p268, %s269, %s270
      %p274 = pneg %p268
      %p275 = scmp.eq.s32.totalorder %s18, 1
      %p276 = por %p274, %p275
      %p277 = scmp.ne.s32.totalorder %s269, %s272
      %p278 = scmp.eq.s32.totalorder %s18, 0
      %p279 = por %p277, %p278
      %p280 = scmp.ne.s32.totalorder %s269, %s272
      %p281 = scmp.eq.s32.totalorder %s23, 1
      %p282 = por %p280, %p281
      %p283 = scmp.ne.s32.totalorder %s272, %s273
      %p284 = scmp.eq.s32.totalorder %s23, 0
      %p285 = por %p283, %p284
      %p286 = scmp.ne.s32.totalorder %s272, %s273
      %p287 = scmp.eq.s32.totalorder %s24, 1
      %p288 = por %p286, %p287
      %p290 = scmp.ne.s32.totalorder %s273, %s289
      %p291 = scmp.eq.s32.totalorder %s24, 0
      %p292 = por %p290, %p291
      %p293 = scmp.le.s32.totalorder 1, %s18
      %p294 = scmp.lt.s32.totalorder %s18, 3
      %p295 = pnand %p293, %p294
      %p296 = pneg %p295
      // Predicated region
      $region9: #{_lambda_.1} parent=5 // pred_check
        _
      $region10: #{_lambda_.1} parent=5 // pred_check_branch
        %298 = sbr.rel (%p295) target = $region12
      $region11: #{_lambda_.1} parent=5 // pred_region
        %s299 = ssub.s32 %s18, 1
        // Predicated region
        $region13: #{_lambda_.1} parent=11 // pred_check
          %p300 = pneg %p91
        $region14: #{_lambda_.1} parent=11 // pred_check_branch
          %302 = sbr.rel (%p300) target = $region16
        $region15: #{_lambda_.1} parent=11 // pred_region
          _
        $region16: #{_lambda_.1} parent=11 // pred_fallthru
          _
        // Predicated region
        $region17: #{_lambda_.1} parent=11 // pred_check
          %p303 = pneg %p112
        $region18: #{_lambda_.1} parent=11 // pred_check_branch
          %305 = sbr.rel (%p303) target = $region20
        $region19: #{_lambda_.1} parent=11 // pred_region
          _
        $region20: #{_lambda_.1} parent=11 // pred_fallthru
          _
        // Predicated region
        $region21: #{_lambda_.1} parent=11 // pred_check
          %p306 = pneg %p133
        $region22: #{_lambda_.1} parent=11 // pred_check_branch
          %308 = sbr.rel (%p306) target = $region24
        $region23: #{_lambda_.1} parent=11 // pred_region
          %310 = vsyncadd [#allocation3], 0
          %s311 = sshll.u32 %s4, 4
          %s312 = int_to_ptr.hbm [resolvable:$true] %s311
          %s313 = sshll.u32 [#allocation2], 4
          %s314 = int_to_ptr.vmem [resolvable:$true] %s313
          %319 = dma.hbm_to_vmem [thread:$0]  %s312, 256, %s314, [#allocation3], 64, 64, 4
        $region24: #{_lambda_.1} parent=11 // pred_fallthru
          _
        // Predicated region
        $region25: #{_lambda_.1} parent=11 // pred_check
          %p320 = pneg %p154
        $region26: #{_lambda_.1} parent=11 // pred_check_branch
          %322 = sbr.rel (%p320) target = $region28
        $region27: #{_lambda_.1} parent=11 // pred_region
          _
        $region28: #{_lambda_.1} parent=11 // pred_fallthru
          _
        // Predicated region
        $region29: #{_lambda_.1} parent=11 // pred_check
          %p323 = pneg %p175
        $region30: #{_lambda_.1} parent=11 // pred_check_branch
          %325 = sbr.rel (%p323) target = $region32
        $region31: #{_lambda_.1} parent=11 // pred_region
          _
        $region32: #{_lambda_.1} parent=11 // pred_fallthru
          _
        // Predicated region
        $region33: #{_lambda_.1} parent=11 // pred_check
          %p326 = pneg %p196
        $region34: #{_lambda_.1} parent=11 // pred_check_branch
          %328 = sbr.rel (%p326) target = $region36
        $region35: #{_lambda_.1} parent=11 // pred_region
          _
        $region36: #{_lambda_.1} parent=11 // pred_fallthru
          _
        // Predicated region
        $region37: #{_lambda_.1} parent=11 // pred_check
          %p329 = pneg %p217
        $region38: #{_lambda_.1} parent=11 // pred_check_branch
          %331 = sbr.rel (%p329) target = $region40
        $region39: #{_lambda_.1} parent=11 // pred_region
          _
        $region40: #{_lambda_.1} parent=11 // pred_fallthru
          _
        // Predicated region
        $region41: #{_lambda_.1} parent=11 // pred_check
          %p332 = pneg %p238
        $region42: #{_lambda_.1} parent=11 // pred_check_branch
          %334 = sbr.rel (%p332) target = $region44
        $region43: #{_lambda_.1} parent=11 // pred_region
          _
        $region44: #{_lambda_.1} parent=11 // pred_fallthru
          _
        // Predicated region
        $region45: #{_lambda_.1} parent=11 // pred_check
          %p335 = pneg %p259
        $region46: #{_lambda_.1} parent=11 // pred_check_branch
          %337 = sbr.rel (%p335) target = $region48
        $region47: #{_lambda_.1} parent=11 // pred_region
          _
        $region48: #{_lambda_.1} parent=11 // pred_fallthru
          _
      $region12: #{_lambda_.1} parent=5 // pred_fallthru
        _
      %p338 = scmp.lt.s32.totalorder %s18, 2
      // Predicated region
      $region49: #{_lambda_.1} parent=5 // pred_check
        %p339 = pneg %p338
      $region50: #{_lambda_.1} parent=5 // pred_check_branch
        %341 = sbr.rel (%p339) target = $region52
      $region51: #{_lambda_.1} parent=5 // pred_region
        // Predicated region
        $region53: #{_lambda_.1} parent=51 // pred_check
          %p342 = pneg %p38
        $region54: #{_lambda_.1} parent=51 // pred_check_branch
          %344 = sbr.rel (%p342) target = $region56
        $region55: #{_lambda_.1} parent=51 // pred_region
          %p345 = scmp.lt.s32.totalorder %s18, 1
          %s346 = scalar_select %p345, %s18, 1
          %s347 = smul.addr %s346, 8
          %s348 = scalar_lea.vmem %s0, %s347
        $region56: #{_lambda_.1} parent=51 // pred_fallthru
          _
        // Predicated region
        $region57: #{_lambda_.1} parent=51 // pred_check
          %p349 = pneg %p64
        $region58: #{_lambda_.1} parent=51 // pred_check_branch
          %351 = sbr.rel (%p349) target = $region60
        $region59: #{_lambda_.1} parent=51 // pred_region
          %p352 = scmp.lt.s32.totalorder %s18, 1
          %s353 = scalar_select %p352, %s18, 1
          %s354 = smul.addr %s353, 8
          %s355 = scalar_lea.vmem %s1, %s354
        $region60: #{_lambda_.1} parent=51 // pred_fallthru
          _
      $region52: #{_lambda_.1} parent=5 // pred_fallthru
        _
      %p356 = scmp.le.s32.totalorder 1, %s18
      %p357 = scmp.lt.s32.totalorder %s18, 3
      %p358 = pnand %p356, %p357
      %p359 = pneg %p358
      // Predicated region
      $region61: #{_lambda_.1} parent=5 // pred_check
        _
      $region62: #{_lambda_.1} parent=5 // pred_check_branch
        %361 = sbr.rel (%p358) target = $region64
      $region63: #{_lambda_.1} parent=5 // pred_region
        %s362 = ssub.s32 %s18, 1
        // Predicated region
        $region65: #{_lambda_.1} parent=63 // pred_check
          %p363 = pneg %p133
        $region66: #{_lambda_.1} parent=63 // pred_check_branch
          %365 = sbr.rel (%p363) target = $region68
        $region67: #{_lambda_.1} parent=63 // pred_region
          %367 = dma.done [#allocation3], 256
        $region68: #{_lambda_.1} parent=63 // pred_fallthru
          _
        %p368 = scmp.lt.s32.totalorder %s23, 1
        %s369 = scalar_select %p368, %s23, 1
        %s370 = smul.addr %s369, 8
        %s371 = scalar_lea.vmem %s0, %s370
        %p372 = pneg %p44
        %p373 = pneg %p41
        %p374 = scmp.lt.s32.totalorder %s23, 1
        %s375 = scalar_select %p374, %s23, 1
        %s376 = smul.addr %s375, 8
        %s377 = scalar_lea.vmem %s1, %s376
        %p378 = pneg %p70
        %p379 = pneg %p67
        %p380 = pneg %p91
        %p381 = pneg %p88
        %p382 = pneg %p112
        %p383 = pneg %p109
        %p384 = pneg %p133
        %p385 = pneg %p130
        %p386 = pneg %p154
        %p387 = pneg %p151
        %p388 = pneg %p175
        %p389 = pneg %p172
        %p390 = pneg %p196
        %p391 = pneg %p193
        %p392 = pneg %p217
        %p393 = pneg %p214
        %p394 = pneg %p238
        %p395 = pneg %p235
        %p396 = pneg %p259
        %p397 = pneg %p256
        %p398 = pneg %p285
        %p399 = pneg %p282
        %p400 = scmp.lt.s32.totalorder %s23, 1
        %s401 = scalar_select %p400, %s23, 1
        %s402 = smul.addr %s401, 8
        %s403 = scalar_lea.vmem %s11, %s402
        %p404 = scmp.lt.s32.totalorder %s23, 1
        %s405 = scalar_select %p404, %s23, 1
        %s406 = smul.addr %s405, 8
        %s407 = scalar_lea.vmem %s0, %s406
        %p408 = scmp.lt.s32.totalorder %s23, 1
        %s409 = scalar_select %p408, %s23, 1
        %s410 = smul.addr %s409, 8
        %s411 = scalar_lea.vmem %s1, %s410
        %p412 = scmp.lt.s32.totalorder %s23, 1
        %s413 = scalar_select %p412, %s23, 1
        %s414 = smul.addr %s413, 8
        %s415 = scalar_lea.vmem %s11, %s414
        %v417 = vld [vmem:[%s411] sm:$0xff]
        %v418 = vld [vmem:[%s2] sm:$0x3]
        %v419 = vld [vmem:[%s3] sm:$0x1]
        %v420 = vld [vmem:[#allocation2] sm:$0xf]
        %v421 = vld [vmem:[#allocation2 + $0x4] sm:$0xf]
        %v422 = vld [vmem:[#allocation2 + $0x8] sm:$0xf]
        %v423 = vld [vmem:[#allocation2 + $0xc] sm:$0xf]
        %v424 = vld [vmem:[%s5] sm:$0x1]
        %v425 = vld [vmem:[%s6] sm:$0xf]
        %v426 = vld [vmem:[%s6 + $0x4] sm:$0xf]
        %v427 = vld [vmem:[%s6 + $0x8] sm:$0xf]
        %v428 = vld [vmem:[%s6 + $0xc] sm:$0xf]
        %v429 = vld [vmem:[%s7] sm:$0x1]
        %v430 = vld [vmem:[%s9] sm:$0xf]
        %v431 = vld [vmem:[%s9 + $0x4] sm:$0xf]
        %v432 = vld [vmem:[%s9 + $0x8] sm:$0xf]
        %v433 = vld [vmem:[%s9 + $0xc] sm:$0xf]
        %v434 = vld [vmem:[%s10] sm:$0x1]
        %v435 = vld [vmem:[%s407] sm:$0xff]
        %437 = vset.pattern.permute.xlu0 0
        %438 = vperm.xlu0 %437, %v417
        %v439 = vpop.permute.xlu0 %438
        %v441 = vsub.f32 %v435, %v439
        %v442 = vpack.c.bf16 %v441, %v441
        %v444 = vperm.slane %v419, 0
        %vm446 = vcmask 31744
        %v448 = vsel %vm446, %v442, 0
        %vm450 = vcmask 1041408
        %v452 = vsel %vm450, %v418, 0
        %454 = vmatpush.bf16.msra.mxu0 0
        %455 = vmatpush.bf16.msra.mxu0 0
        %456 = vmatpush.bf16.msra.mxu0 0
        %457 = vmatpush.bf16.msra.mxu0 0
        %458 = vmatpush.bf16.msra.mxu0 0
        %459 = vmatpush.bf16.msra.mxu0 0
        %460 = vmatpush.bf16.msra.mxu0 0
        %461 = vmatpush.bf16.msra.mxu0 %v452
        %462 = vmatmul.bf16.gmra.mxu0 %v448
        %v463 = vpop.f32.mrf.mxu0
        %v464 = vadd.f32 %v444, %v463
        %v465 = vpop.f32.mrf.mxu0
        %466 = vdwg.mxu0
        %v467 = vmax.f32 %v464, 0.0
        %v468 = vpack.c.bf16 %v467, %v467
        %v470 = vperm.slane %v424, 0
        %v476 = vunpack.c.l.b16 %v420
        %v477 = vunpack.c.l.b16 %v421
        %v478 = vunpack.c.l.b16 %v422
        %v479 = vunpack.c.l.b16 %v423
        %v480 = vpack.c.b16 %v477, %v476
        %v481 = vpack.c.b16 %v479, %v478
        %vm484 = vcmask 261120
        %v486 = vsel %vm484, %v468, 0
        %488 = vmatpush.bf16.msra.mxu0 0
        %489 = vmatpush.bf16.msra.mxu0 0
        %490 = vmatpush.bf16.msra.mxu0 0
        %491 = vmatpush.bf16.msra.mxu0 0
        %492 = vmatpush.bf16.msra.mxu0 0
        %493 = vmatpush.bf16.msra.mxu0 0
        %494 = vmatpush.bf16.msra.mxu0 %v481
        %495 = vmatpush.bf16.msra.mxu0 %v480
        %496 = vmatmul.bf16.gmra.mxu0 %v486
        %v497 = vpop.f32.mrf.mxu0
        %v498 = vadd.f32 %v470, %v497
        %v499 = vpop.f32.mrf.mxu0
        %500 = vdwg.mxu0
        %v505 = vunpack.c.l.b16 %v425
        %v506 = vunpack.c.l.b16 %v426
        %v507 = vunpack.c.l.b16 %v427
        %v508 = vunpack.c.l.b16 %v428
        %v509 = vpack.c.b16 %v506, %v505
        %v510 = vpack.c.b16 %v508, %v507
        %v514 = vsel %vm484, 0, 0
        %516 = vmatpush.bf16.msra.mxu0 0
        %517 = vmatpush.bf16.msra.mxu0 0
        %518 = vmatpush.bf16.msra.mxu0 0
        %519 = vmatpush.bf16.msra.mxu0 0
        %520 = vmatpush.bf16.msra.mxu0 0
        %521 = vmatpush.bf16.msra.mxu0 0
        %522 = vmatpush.bf16.msra.mxu0 %v510
        %523 = vmatpush.bf16.msra.mxu0 %v509
        %524 = vmatmul.bf16.gmra.mxu0 %v514
        %v525 = vpop.f32.mrf.mxu0
        %v526 = vadd.f32 0.0, %v525
        %v527 = vpop.f32.mrf.mxu0
        %528 = vdwg.mxu0
        %v529 = vadd.f32 %v498, %v526
        %v530 = vxor.u32 %v529, 2147483648
        %v531 = vmul.f32 %v530, 1.442695
        %v532 = vpow.pop %v531
        %v533 = vadd.f32 %v532, 1.0
        %v534 = vrcp.pop %v533
        %v535 = vmul.f32 %v533, %v534
        %v536 = vsub.f32 1.0, %v535
        %v537 = vmul.f32 %v534, %v536
        %v538 = vadd.f32 %v534, %v537
        %vm539 = vweird.f32 %v533
        %vm540 = vweird.f32 %v534
        %vm541 = vmor %vm539, %vm540
        %v542 = vsel %vm541, %v534, %v538
        %v543 = vand.u32 2147483647, %v533
        %vm544 = vcmp.eq.f32.partialorder %v543, 8.507059e+37
        %v545 = vand.u32 %v533, 2147483648
        %v546 = vor.u32 1.1754944e-38, %v545
        %v547 = vsel %vm544, %v546, %v542
        %v548 = vmul.f32 1.0, %v547
        %v550 = vperm.slane %v429, 0
        %551 = vrot.lane.b32.xlu0 %v550, 64
        %v552 = vpop.permute.xlu0 %551
        %v554 = vadd.f32 %v526, %v552
        %556 = vrot.lane.b32.xlu0 %v554, 64
        %v557 = vpop.permute.xlu0 %556
        %v559 = vmul.f32 %v548, %v557
        %561 = vrot.lane.b32.xlu0 %v559, 64
        %v562 = vpop.permute.xlu0 %561
        %v564 = vadd.f32 %v498, %v562
        %v565 = vtanh.pop %v564
        %v566 = vsub.f32 1.0, %v548
        %568 = vrot.lane.b32.xlu0 %v565, 96
        %v569 = vpop.permute.xlu0 %568
        %v571 = vmul.f32 %v566, %v569
        %v572 = vmul.f32 %v548, 0.0
        %v573 = vadd.f32 %v571, %v572
        %575 = vrot.lane.b32.xlu0 %v442, 124
        %v576 = vpop.permute.xlu0 %575
        %v578 = vsel %vm446, %v576, 0
        %580 = vmatpush.bf16.msra.mxu0 0
        %581 = vmatpush.bf16.msra.mxu0 0
        %582 = vmatpush.bf16.msra.mxu0 0
        %583 = vmatpush.bf16.msra.mxu0 0
        %584 = vmatpush.bf16.msra.mxu0 0
        %585 = vmatpush.bf16.msra.mxu0 0
        %586 = vmatpush.bf16.msra.mxu0 0
        %587 = vmatpush.bf16.msra.mxu0 %v452
        %588 = vmatmul.bf16.gmra.mxu0 %v578
        %v589 = vpop.f32.mrf.mxu0
        %v590 = vadd.f32 %v444, %v589
        %v591 = vpop.f32.mrf.mxu0
        %592 = vdwg.mxu0
        %v593 = vmax.f32 %v590, 0.0
        %v594 = vpack.c.bf16 %v593, %v593
        %v596 = vsel %vm484, %v594, 0
        %598 = vmatpush.bf16.msra.mxu0 0
        %599 = vmatpush.bf16.msra.mxu0 0
        %600 = vmatpush.bf16.msra.mxu0 0
        %601 = vmatpush.bf16.msra.mxu0 0
        %602 = vmatpush.bf16.msra.mxu0 0
        %603 = vmatpush.bf16.msra.mxu0 0
        %604 = vmatpush.bf16.msra.mxu0 %v481
        %605 = vmatpush.bf16.msra.mxu0 %v480
        %606 = vmatmul.bf16.gmra.mxu0 %v596
        %v607 = vpop.f32.mrf.mxu0
        %v608 = vadd.f32 %v470, %v607
        %v609 = vpop.f32.mrf.mxu0
        %610 = vdwg.mxu0
        %v611 = vpack.c.bf16 %v573, %v573
        %613 = vrot.lane.b32.xlu0 %v611, 96
        %v614 = vpop.permute.xlu0 %613
        %v616 = vsel %vm484, %v614, 0
        %618 = vmatpush.bf16.msra.mxu0 0
        %619 = vmatpush.bf16.msra.mxu0 0
        %620 = vmatpush.bf16.msra.mxu0 0
        %621 = vmatpush.bf16.msra.mxu0 0
        %622 = vmatpush.bf16.msra.mxu0 0
        %623 = vmatpush.bf16.msra.mxu0 0
        %624 = vmatpush.bf16.msra.mxu0 %v510
        %625 = vmatpush.bf16.msra.mxu0 %v509
        %626 = vmatmul.bf16.gmra.mxu0 %v616
        %v627 = vpop.f32.mrf.mxu0
        %v628 = vadd.f32 0.0, %v627
        %v629 = vpop.f32.mrf.mxu0
        %630 = vdwg.mxu0
        %v631 = vadd.f32 %v608, %v628
        %v632 = vxor.u32 %v631, 2147483648
        %v633 = vmul.f32 %v632, 1.442695
        %v634 = vpow.pop %v633
        %v635 = vadd.f32 %v634, 1.0
        %v636 = vrcp.pop %v635
        %v637 = vmul.f32 %v635, %v636
        %v638 = vsub.f32 1.0, %v637
        %v639 = vmul.f32 %v636, %v638
        %v640 = vadd.f32 %v636, %v639
        %vm641 = vweird.f32 %v635
        %vm642 = vweird.f32 %v636
        %vm643 = vmor %vm641, %vm642
        %v644 = vsel %vm643, %v636, %v640
        %v645 = vand.u32 2147483647, %v635
        %vm646 = vcmp.eq.f32.partialorder %v645, 8.507059e+37
        %v647 = vand.u32 %v635, 2147483648
        %v648 = vor.u32 1.1754944e-38, %v647
        %v649 = vsel %vm646, %v648, %v644
        %v650 = vmul.f32 1.0, %v649
        %v651 = vadd.f32 %v628, %v552
        %653 = vrot.lane.b32.xlu0 %v651, 64
        %v654 = vpop.permute.xlu0 %653
        %v656 = vmul.f32 %v650, %v654
        %658 = vrot.lane.b32.xlu0 %v656, 64
        %v659 = vpop.permute.xlu0 %658
        %v661 = vadd.f32 %v608, %v659
        %v662 = vtanh.pop %v661
        %v663 = vsub.f32 1.0, %v650
        %665 = vrot.lane.b32.xlu0 %v662, 96
        %v666 = vpop.permute.xlu0 %665
        %v668 = vmul.f32 %v663, %v666
        %v669 = vmul.f32 %v650, %v573
        %v670 = vadd.f32 %v668, %v669
        %671 = vrot.lane.b32.xlu0 %v442, 120
        %v672 = vpop.permute.xlu0 %671
        %v674 = vsel %vm446, %v672, 0
        %676 = vmatpush.bf16.msra.mxu0 0
        %677 = vmatpush.bf16.msra.mxu0 0
        %678 = vmatpush.bf16.msra.mxu0 0
        %679 = vmatpush.bf16.msra.mxu0 0
        %680 = vmatpush.bf16.msra.mxu0 0
        %681 = vmatpush.bf16.msra.mxu0 0
        %682 = vmatpush.bf16.msra.mxu0 0
        %683 = vmatpush.bf16.msra.mxu0 %v452
        %684 = vmatmul.bf16.gmra.mxu0 %v674
        %v685 = vpop.f32.mrf.mxu0
        %v686 = vadd.f32 %v444, %v685
        %v687 = vpop.f32.mrf.mxu0
        %688 = vdwg.mxu0
        %v689 = vmax.f32 %v686, 0.0
        %v690 = vpack.c.bf16 %v689, %v689
        %v692 = vsel %vm484, %v690, 0
        %694 = vmatpush.bf16.msra.mxu0 0
        %695 = vmatpush.bf16.msra.mxu0 0
        %696 = vmatpush.bf16.msra.mxu0 0
        %697 = vmatpush.bf16.msra.mxu0 0
        %698 = vmatpush.bf16.msra.mxu0 0
        %699 = vmatpush.bf16.msra.mxu0 0
        %700 = vmatpush.bf16.msra.mxu0 %v481
        %701 = vmatpush.bf16.msra.mxu0 %v480
        %702 = vmatmul.bf16.gmra.mxu0 %v692
        %v703 = vpop.f32.mrf.mxu0
        %v704 = vadd.f32 %v470, %v703
        %v705 = vpop.f32.mrf.mxu0
        %706 = vdwg.mxu0
        %v707 = vpack.c.bf16 %v670, %v670
        %709 = vrot.lane.b32.xlu0 %v707, 96
        %v710 = vpop.permute.xlu0 %709
        %v712 = vsel %vm484, %v710, 0
        %714 = vmatpush.bf16.msra.mxu0 0
        %715 = vmatpush.bf16.msra.mxu0 0
        %716 = vmatpush.bf16.msra.mxu0 0
        %717 = vmatpush.bf16.msra.mxu0 0
        %718 = vmatpush.bf16.msra.mxu0 0
        %719 = vmatpush.bf16.msra.mxu0 0
        %720 = vmatpush.bf16.msra.mxu0 %v510
        %721 = vmatpush.bf16.msra.mxu0 %v509
        %722 = vmatmul.bf16.gmra.mxu0 %v712
        %v723 = vpop.f32.mrf.mxu0
        %v724 = vadd.f32 0.0, %v723
        %v725 = vpop.f32.mrf.mxu0
        %726 = vdwg.mxu0
        %v727 = vadd.f32 %v704, %v724
        %v728 = vxor.u32 %v727, 2147483648
        %v729 = vmul.f32 %v728, 1.442695
        %v730 = vpow.pop %v729
        %v731 = vadd.f32 %v730, 1.0
        %v732 = vrcp.pop %v731
        %v733 = vmul.f32 %v731, %v732
        %v734 = vsub.f32 1.0, %v733
        %v735 = vmul.f32 %v732, %v734
        %v736 = vadd.f32 %v732, %v735
        %vm737 = vweird.f32 %v731
        %vm738 = vweird.f32 %v732
        %vm739 = vmor %vm737, %vm738
        %v740 = vsel %vm739, %v732, %v736
        %v741 = vand.u32 2147483647, %v731
        %vm742 = vcmp.eq.f32.partialorder %v741, 8.507059e+37
        %v743 = vand.u32 %v731, 2147483648
        %v744 = vor.u32 1.1754944e-38, %v743
        %v745 = vsel %vm742, %v744, %v740
        %v746 = vmul.f32 1.0, %v745
        %v747 = vadd.f32 %v724, %v552
        %749 = vrot.lane.b32.xlu0 %v747, 64
        %v750 = vpop.permute.xlu0 %749
        %v752 = vmul.f32 %v746, %v750
        %754 = vrot.lane.b32.xlu0 %v752, 64
        %v755 = vpop.permute.xlu0 %754
        %v757 = vadd.f32 %v704, %v755
        %v758 = vtanh.pop %v757
        %v759 = vsub.f32 1.0, %v746
        %761 = vrot.lane.b32.xlu0 %v758, 96
        %v762 = vpop.permute.xlu0 %761
        %v764 = vmul.f32 %v759, %v762
        %v765 = vmul.f32 %v746, %v670
        %v766 = vadd.f32 %v764, %v765
        %767 = vrot.lane.b32.xlu0 %v442, 116
        %v768 = vpop.permute.xlu0 %767
        %v770 = vsel %vm446, %v768, 0
        %772 = vmatpush.bf16.msra.mxu0 0
        %773 = vmatpush.bf16.msra.mxu0 0
        %774 = vmatpush.bf16.msra.mxu0 0
        %775 = vmatpush.bf16.msra.mxu0 0
        %776 = vmatpush.bf16.msra.mxu0 0
        %777 = vmatpush.bf16.msra.mxu0 0
        %778 = vmatpush.bf16.msra.mxu0 0
        %779 = vmatpush.bf16.msra.mxu0 %v452
        %780 = vmatmul.bf16.gmra.mxu0 %v770
        %v781 = vpop.f32.mrf.mxu0
        %v782 = vadd.f32 %v444, %v781
        %v783 = vpop.f32.mrf.mxu0
        %784 = vdwg.mxu0
        %v785 = vmax.f32 %v782, 0.0
        %v786 = vpack.c.bf16 %v785, %v785
        %v788 = vsel %vm484, %v786, 0
        %790 = vmatpush.bf16.msra.mxu0 0
        %791 = vmatpush.bf16.msra.mxu0 0
        %792 = vmatpush.bf16.msra.mxu0 0
        %793 = vmatpush.bf16.msra.mxu0 0
        %794 = vmatpush.bf16.msra.mxu0 0
        %795 = vmatpush.bf16.msra.mxu0 0
        %796 = vmatpush.bf16.msra.mxu0 %v481
        %797 = vmatpush.bf16.msra.mxu0 %v480
        %798 = vmatmul.bf16.gmra.mxu0 %v788
        %v799 = vpop.f32.mrf.mxu0
        %v800 = vadd.f32 %v470, %v799
        %v801 = vpop.f32.mrf.mxu0
        %802 = vdwg.mxu0
        %v803 = vpack.c.bf16 %v766, %v766
        %805 = vrot.lane.b32.xlu0 %v803, 96
        %v806 = vpop.permute.xlu0 %805
        %v808 = vsel %vm484, %v806, 0
        %810 = vmatpush.bf16.msra.mxu0 0
        %811 = vmatpush.bf16.msra.mxu0 0
        %812 = vmatpush.bf16.msra.mxu0 0
        %813 = vmatpush.bf16.msra.mxu0 0
        %814 = vmatpush.bf16.msra.mxu0 0
        %815 = vmatpush.bf16.msra.mxu0 0
        %816 = vmatpush.bf16.msra.mxu0 %v510
        %817 = vmatpush.bf16.msra.mxu0 %v509
        %818 = vmatmul.bf16.gmra.mxu0 %v808
        %v819 = vpop.f32.mrf.mxu0
        %v820 = vadd.f32 0.0, %v819
        %v821 = vpop.f32.mrf.mxu0
        %822 = vdwg.mxu0
        %v823 = vadd.f32 %v800, %v820
        %v824 = vxor.u32 %v823, 2147483648
        %v825 = vmul.f32 %v824, 1.442695
        %v826 = vpow.pop %v825
        %v827 = vadd.f32 %v826, 1.0
        %v828 = vrcp.pop %v827
        %v829 = vmul.f32 %v827, %v828
        %v830 = vsub.f32 1.0, %v829
        %v831 = vmul.f32 %v828, %v830
        %v832 = vadd.f32 %v828, %v831
        %vm833 = vweird.f32 %v827
        %vm834 = vweird.f32 %v828
        %vm835 = vmor %vm833, %vm834
        %v836 = vsel %vm835, %v828, %v832
        %v837 = vand.u32 2147483647, %v827
        %vm838 = vcmp.eq.f32.partialorder %v837, 8.507059e+37
        %v839 = vand.u32 %v827, 2147483648
        %v840 = vor.u32 1.1754944e-38, %v839
        %v841 = vsel %vm838, %v840, %v836
        %v842 = vmul.f32 1.0, %v841
        %v843 = vadd.f32 %v820, %v552
        %845 = vrot.lane.b32.xlu0 %v843, 64
        %v846 = vpop.permute.xlu0 %845
        %v848 = vmul.f32 %v842, %v846
        %850 = vrot.lane.b32.xlu0 %v848, 64
        %v851 = vpop.permute.xlu0 %850
        %v853 = vadd.f32 %v800, %v851
        %v854 = vtanh.pop %v853
        %v855 = vsub.f32 1.0, %v842
        %857 = vrot.lane.b32.xlu0 %v854, 96
        %v858 = vpop.permute.xlu0 %857
        %v860 = vmul.f32 %v855, %v858
        %v861 = vmul.f32 %v842, %v766
        %v862 = vadd.f32 %v860, %v861
        %v863 = vpack.c.bf16 %v862, %v862
        %865 = vrot.lane.b32.xlu0 %v863, 96
        %v866 = vpop.permute.xlu0 %865
        %v868 = vsel %vm484, %v866, 0
        %870 = vmatpush.bf16.msra.mxu0 0
        %871 = vmatpush.bf16.msra.mxu0 0
        %872 = vmatpush.bf16.msra.mxu0 0
        %873 = vmatpush.bf16.msra.mxu0 0
        %874 = vmatpush.bf16.msra.mxu0 0
        %875 = vmatpush.bf16.msra.mxu0 0
        %876 = vmatpush.bf16.msra.mxu0 %v510
        %877 = vmatpush.bf16.msra.mxu0 %v509
        %878 = vmatmul.bf16.gmra.mxu0 %v868
        %v879 = vpop.f32.mrf.mxu0
        %v880 = vadd.f32 0.0, %v879
        %v881 = vpop.f32.mrf.mxu0
        %882 = vdwg.mxu0
        %v883 = vadd.f32 %v880, %v552
        %v884 = vld [vmem:[%s8] sm:$0xff]
        %v885 = vadd.f32 %v884, %v880
        %v886 = vxor.u32 %v885, 2147483648
        %v887 = vmul.f32 %v886, 1.442695
        %v888 = vpow.pop %v887
        %v889 = vadd.f32 %v888, 1.0
        %v890 = vrcp.pop %v889
        %v891 = vmul.f32 %v889, %v890
        %v892 = vsub.f32 1.0, %v891
        %v893 = vmul.f32 %v890, %v892
        %v894 = vadd.f32 %v890, %v893
        %vm895 = vweird.f32 %v889
        %vm896 = vweird.f32 %v890
        %vm897 = vmor %vm895, %vm896
        %v898 = vsel %vm897, %v890, %v894
        %v899 = vand.u32 2147483647, %v889
        %vm900 = vcmp.eq.f32.partialorder %v899, 8.507059e+37
        %v901 = vand.u32 %v889, 2147483648
        %v902 = vor.u32 1.1754944e-38, %v901
        %v903 = vsel %vm900, %v902, %v898
        %v904 = vmul.f32 1.0, %v903
        %906 = vrot.lane.b32.xlu0 %v883, 64
        %v907 = vpop.permute.xlu0 %906
        %v909 = vmul.f32 %v904, %v907
        %911 = vrot.lane.b32.xlu0 %v909, 64
        %v912 = vpop.permute.xlu0 %911
        %v914 = vadd.f32 %v884, %v912
        %v915 = vtanh.pop %v914
        %v916 = vsub.f32 1.0, %v904
        %918 = vrot.lane.b32.xlu0 %v915, 96
        %v919 = vpop.permute.xlu0 %918
        %v921 = vmul.f32 %v916, %v919
        %v922 = vmul.f32 %v904, %v862
        %v923 = vadd.f32 %v921, %v922
        %s924 = scalar_lea.vmem %s8, 8
        %v925 = vld [vmem:[%s924] sm:$0xff]
        %v926 = vadd.f32 %v925, %v880
        %v927 = vxor.u32 %v926, 2147483648
        %v928 = vmul.f32 %v927, 1.442695
        %v929 = vpow.pop %v928
        %v930 = vadd.f32 %v929, 1.0
        %v931 = vrcp.pop %v930
        %v932 = vmul.f32 %v930, %v931
        %v933 = vsub.f32 1.0, %v932
        %v934 = vmul.f32 %v931, %v933
        %v935 = vadd.f32 %v931, %v934
        %vm936 = vweird.f32 %v930
        %vm937 = vweird.f32 %v931
        %vm938 = vmor %vm936, %vm937
        %v939 = vsel %vm938, %v931, %v935
        %v940 = vand.u32 2147483647, %v930
        %vm941 = vcmp.eq.f32.partialorder %v940, 8.507059e+37
        %v942 = vand.u32 %v930, 2147483648
        %v943 = vor.u32 1.1754944e-38, %v942
        %v944 = vsel %vm941, %v943, %v939
        %v945 = vmul.f32 1.0, %v944
        %v946 = vmul.f32 %v945, %v907
        %948 = vrot.lane.b32.xlu0 %v946, 64
        %v949 = vpop.permute.xlu0 %948
        %v951 = vadd.f32 %v925, %v949
        %v952 = vtanh.pop %v951
        %v953 = vsub.f32 1.0, %v945
        %955 = vrot.lane.b32.xlu0 %v952, 96
        %v956 = vpop.permute.xlu0 %955
        %v958 = vmul.f32 %v953, %v956
        %v959 = vmul.f32 %v945, %v862
        %v960 = vadd.f32 %v958, %v959
        %v961 = vpack.c.bf16 %v960, %v923
        %v963 = vperm.slane %v434, 0
        %966 = vrot.lane.b32.xlu0 %v961, 96
        %v967 = vpop.permute.xlu0 %966
        %v972 = vunpack.c.l.b16 %v430
        %v973 = vunpack.c.l.b16 %v431
        %v974 = vunpack.c.l.b16 %v432
        %v975 = vunpack.c.l.b16 %v433
        %v976 = vpack.c.b16 %v973, %v972
        %v977 = vpack.c.b16 %v975, %v974
        %v981 = vsel %vm484, %v967, 0
        %983 = vmatpush.bf16.msra.mxu0 0
        %984 = vmatpush.bf16.msra.mxu0 0
        %985 = vmatpush.bf16.msra.mxu0 0
        %986 = vmatpush.bf16.msra.mxu0 0
        %987 = vmatpush.bf16.msra.mxu0 0
        %988 = vmatpush.bf16.msra.mxu0 0
        %989 = vmatpush.bf16.msra.mxu0 %v977
        %990 = vmatpush.bf16.msra.mxu0 %v976
        %991 = vmatmul.bf16.gmra.mxu0 %v981
        %v992 = vpop.f32.mrf.mxu0
        %v993 = vadd.f32 %v963, %v992
        %v994 = vpop.f32.mrf.mxu0
        %v995 = vadd.f32 %v963, %v994
        %996 = vdwg.mxu0
        %vm997 = vcmask 1047616
        %998 = vst.msk [vmem:[%s415] sm:$0xff] %vm997, 0.0
        %v999 = vadd.f32 %v993, %v439
        %1000 = vst.msk [vmem:[%s415] sm:$0xff] %vm446, %v999
        %v1001 = vadd.f32 %v995, %v439
        %1003 = vrot.lane.b32.xlu0 %v1001, 4
        %v1004 = vpop.permute.xlu0 %1003
        %vm1006 = vcmask 64544
        %1007 = vst.msk [vmem:[%s415] sm:$0xff] %vm1006, %v1004
        %p1008 = scmp.lt.s32.totalorder %s23, 1
        %s1009 = scalar_select %p1008, %s23, 1
        %s1010 = smul.addr %s1009, 8
        %s1011 = scalar_lea.vmem %s11, %s1010
        // Predicated region
        $region69: #{_lambda_.1} parent=63 // pred_check
          %p1012 = pneg %p282
        $region70: #{_lambda_.1} parent=63 // pred_check_branch
          %1014 = sbr.rel (%p1012) target = $region72
        $region71: #{_lambda_.1} parent=63 // pred_region
          _
        $region72: #{_lambda_.1} parent=63 // pred_fallthru
          _
      $region64: #{_lambda_.1} parent=5 // pred_fallthru
        _
      %p1015 = scmp.le.s32.totalorder 2, %s18
      // Predicated region
      $region73: #{_lambda_.1} parent=5 // pred_check
        %p1016 = pneg %p1015
      $region74: #{_lambda_.1} parent=5 // pred_check_branch
        %1018 = sbr.rel (%p1016) target = $region76
      $region75: #{_lambda_.1} parent=5 // pred_region
        %s1019 = ssub.s32 %s18, 2
        // Predicated region
        $region77: #{_lambda_.1} parent=75 // pred_check
          %p1020 = pneg %p288
        $region78: #{_lambda_.1} parent=75 // pred_check_branch
          %1022 = sbr.rel (%p1020) target = $region80
        $region79: #{_lambda_.1} parent=75 // pred_region
          %p1023 = scmp.lt.s32.totalorder %s24, 1
          %s1024 = scalar_select %p1023, %s24, 1
          %s1025 = smul.addr %s1024, 8
          %s1026 = scalar_lea.vmem %s11, %s1025
        $region80: #{_lambda_.1} parent=75 // pred_fallthru
          _
      $region76: #{_lambda_.1} parent=5 // pred_fallthru
        _
    $region6: #{_lambda_.1} parent=1 // loop_footer
      %s22 = sadd.s32 1, %s18
    $region7: #{_lambda_.1} parent=1 // loop_footer_branch
      %17 = sbr.rel target = $region3
    $region8: #{_lambda_.1} parent=1 // loop_exit
      _
    %1027 = vsyncpa [#allocation3], 1
    %s1028 = scalar_lea.sflag [#allocation3], 1
    %1029 = vsyncpa %s1028, 1

</llo_original>
